<compile_context>
chip_gen: v7x
topology: tpu7x:2x2x1
jax: 0.10.0
libtpu: 0.0.40
codegen_flags: <defaults>
</compile_context>

<pallas_src>
import functools

import jax
import jax.numpy as jnp
from jax.experimental import pallas as pl
from jax.experimental.pallas import tpu as pltpu

_VMEM_LIMIT_BYTES = 32 * 1024 * 1024          # fits v5e/v6e (128 MiB) and v7x (64 MiB physical)
_MASK_VALUE = -1e30                           # large finite negative (avoids -inf - -inf NaNs)
_MM_PRECISION = jax.lax.Precision.HIGHEST     # full-f32 matmuls: kernel == XLA reference numerics


def _pick_q_tile(seq_len: int, target: int, score_budget_bytes: int = 8 * 1024 * 1024) -> int:
    """Largest multiple-of-8 divisor of seq_len that is <= target and keeps the (tq, T) f32
    score tile within a VMEM budget. Falls back to the full extent (always BlockSpec-legal)."""
    cap = max(8, score_budget_bytes // max(seq_len * 4, 1))
    target = min(target, cap)
    if seq_len <= target:
        return seq_len
    if seq_len % 8 != 0:
        return seq_len  # ragged sequence: one full-extent tile satisfies the (8,128) rule
    start = max(8, (target // 8) * 8)
    for cand in range(start, 7, -8):
        if seq_len % cand == 0:
            return cand
    return seq_len


# ----------------------------------------------------------------------------- fused kernel
def _attention_head_kernel(x_ref, wq_ref, wkv_ref, o_ref, *, head_size, tq, seq_len):
    """Fused QKV projection + causal softmax attention for one (batch, q-tile) grid step.

    x_ref:   (1, T, C)  full sequence for this batch element (resident across q-tiles)
    wq_ref:  (C, H)     query weights with the 1/sqrt(C) score scale pre-folded
    wkv_ref: (C, 2H)    [key | value] weights (one fused projection matmul)
    o_ref:   (1, tq, H) output tile
    """
    h = head_size
    qi = pl.program_id(1)
    q_start = pl.multiple_of(qi * tq, tq)

    x_full = x_ref[0]                                   # (T, C)  — K/V source, resident
    x_q = x_ref[0, pl.ds(q_start, tq), :]               # (tq, C) — rows for this q tile

    # Fused K/V projection: one (T, C) x (C, 2H) MXU pass (better N-fill than 2x (C, H)).
    kv = jnp.dot(x_full, wkv_ref[...],
                 preferred_element_type=jnp.float32, precision=_MM_PRECISION)   # (T, 2H)
    k = kv[:, :h]                                       # (T, H)
    v = kv[:, h:]                                       # (T, H)

    # Q projection only for this row tile (scale already folded into wq by the wrapper).
    q = jnp.dot(x_q, wq_ref[...],
                preferred_element_type=jnp.float32, precision=_MM_PRECISION)    # (tq, H)

    # Scores over the whole (resident) key range; causal mask with a finite large negative.
    s = jax.lax.dot_general(q, k, (((1,), (1,)), ((), ())),
                            preferred_element_type=jnp.float32,
                            precision=_MM_PRECISION)                            # (tq, T)
    row = q_start + jax.lax.broadcasted_iota(jnp.int32, (tq, seq_len), 0)
    col = jax.lax.broadcasted_iota(jnp.int32, (tq, seq_len), 1)
    s = jnp.where(col <= row, s, _MASK_VALUE)

    # Exact softmax: K is resident per batch element, so no online-softmax cross-step state.
    m = jnp.max(s, axis=-1, keepdims=True)              # (tq, 1)
    p = jnp.exp(s - m)                                  # (tq, T); masked entries underflow to 0
    l = jnp.sum(p, axis=-1, keepdims=True)              # (tq, 1); >= 1 (diagonal always unmasked)

    out = jnp.dot(p, v, preferred_element_type=jnp.float32,
                  precision=_MM_PRECISION)              # (tq, H)
    o_ref[0] = (out / l).astype(o_ref.dtype)


# ----------------------------------------------------------------------------- wrapper
def attention_head(x, w_key, w_query, w_value, *, q_tile_target: int = 512):
    """x: (B, T, C); w_*: (C, H). Returns (B, T, H). Matches the PyTorch AttentionHead forward
    in eval mode (dropout = identity)."""
    B, T, C = x.shape
    H = w_key.shape[1]
    scale = float(C) ** -0.5

    # Fold the 1/sqrt(C) score scale into the query weights (one tiny (C, H) op, done once).
    w_q_scaled = (w_query * scale).astype(x.dtype)
    w_kv = jnp.concatenate([w_key, w_value], axis=1).astype(x.dtype)   # (C, 2H)

    tq = _pick_q_tile(T, q_tile_target)
    nq = T // tq

    out = pl.pallas_call(
        functools.partial(_attention_head_kernel, head_size=H, tq=tq, seq_len=T),
        out_shape=jax.ShapeDtypeStruct((B, T, H), x.dtype),
        grid_spec=pltpu.PrefetchScalarGridSpec(
            num_scalar_prefetch=0,
            grid=(B, nq),
            in_specs=[
                # Full sequence per batch element; block index depends only on b, so the DMA is
                # elided while only the q-tile index changes (resident K/V source).
                pl.BlockSpec((1, T, C), lambda b, qi: (b, 0, 0)),
                pl.BlockSpec((C, H), lambda b, qi: (0, 0)),          # resident query weights
                pl.BlockSpec((C, 2 * H), lambda b, qi: (0, 0)),      # resident key|value weights
            ],
            out_specs=pl.BlockSpec((1, tq, H), lambda b, qi: (b, qi, 0)),
        ),
        compiler_params=pltpu.CompilerParams(
            # Batch axis shards across TensorCores; q-tile axis kept sequential so the
            # per-batch x block stays resident (DMA elision).
            dimension_semantics=("parallel", "arbitrary"),
            vmem_limit_bytes=_VMEM_LIMIT_BYTES,
        ),
    )(x, w_q_scaled, w_kv)
    return out


# ----------------------------------------------------------------------------- reference / test
def _reference(x, w_key, w_query, w_value):
    B, T, C = x.shape
    pm = _MM_PRECISION
    k = jnp.einsum("btc,ch->bth", x, w_key, precision=pm)
    q = jnp.einsum("btc,ch->bth", x, w_query, precision=pm)
    v = jnp.einsum("btc,ch->bth", x, w_value, precision=pm)
    wei = jnp.einsum("bqh,bkh->bqk", q, k, precision=pm) * (C ** -0.5)
    mask = jnp.tril(jnp.ones((T, T), dtype=bool))
    wei = jnp.where(mask[None, :, :], wei, -jnp.inf)
    wei = jax.nn.softmax(wei, axis=-1)
    return jnp.einsum("bqk,bkh->bqh", wei, v, precision=pm)


def _run_case(key, B, T, C, H, q_tile_target=512):
    kx, kk, kq, kv = jax.random.split(key, 4)
    x = jax.random.normal(kx, (B, T, C), dtype=jnp.float32)
    w_key = jax.random.normal(kk, (C, H), dtype=jnp.float32) * (C ** -0.5)
    w_query = jax.random.normal(kq, (C, H), dtype=jnp.float32) * (C ** -0.5)
    w_value = jax.random.normal(kv, (C, H), dtype=jnp.float32) * (C ** -0.5)

    out = jax.block_until_ready(
        attention_head(x, w_key, w_query, w_value, q_tile_target=q_tile_target))
    ref = _reference(x, w_key, w_query, w_value)
    assert out.shape == (B, T, H)
    err = float(jnp.max(jnp.abs(out - ref)))
    assert jnp.allclose(out, ref, atol=2e-3, rtol=2e-3), (
        f"mismatch vs reference (T={T}, max abs err={err})")


if __name__ == "__main__":
    key = jax.random.PRNGKey(0)
    k1, k2, k3 = jax.random.split(key, 3)

    # Module-sized toy case: block_size=T=8, n_embd=32, head_size=16 (single q tile).
    _run_case(k1, B=2, T=8, C=32, H=16)

    # Multi-q-tile case (nq=2): exercises dynamic q_start and the causal mask across tiles.
    _run_case(k2, B=2, T=128, C=64, H=32, q_tile_target=64)

    # The previously failing larger case (single resident tile, fused in-kernel K/V).
    _run_case(k3, B=2, T=256, C=128, H=64)

    print("KERNEL_OK")
</pallas_src>

<mosaic_0001>
module attributes {stable_mosaic.version = 11 : i64} {
  func.func @_attention_head_kernel(%arg0: i32, %arg1: i32, %arg2: memref<1x8x32xf32, #tpu.memory_space<vmem>>, %arg3: memref<32x16xf32, #tpu.memory_space<vmem>>, %arg4: memref<32x32xf32, #tpu.memory_space<vmem>>, %arg5: memref<1x8x16xf32, #tpu.memory_space<vmem>>) attributes {dimension_semantics = [#tpu.dimension_semantics<parallel>, #tpu.dimension_semantics<arbitrary>], iteration_bounds = array<i64: 2, 1>, scalar_prefetch = 0 : i64, scratch_operands = 0 : i64, tpu.core_type = #tpu.core_type<tc>, window_params = [{transform_indices = @transform_0, window_bounds = array<i64: 1, 8, 32>}, {pipeline_mode = #tpu.pipeline_mode<synchronous>, transform_indices = @transform_1, window_bounds = array<i64: 32, 16>}, {pipeline_mode = #tpu.pipeline_mode<synchronous>, transform_indices = @transform_2, window_bounds = array<i64: 32, 32>}, {transform_indices = @transform_3, window_bounds = array<i64: 1, 8, 16>}]} {
    %c8_i32 = arith.constant 8 : i32
    %0 = arith.muli %arg1, %c8_i32 : i32
    %1 = tpu.assume_multiple %0, 8 : i32
    %c0 = arith.constant 0 : index
    %c0_0 = arith.constant 0 : index
    %c0_1 = arith.constant 0 : index
    %2 = vector.load %arg2[%c0, %c0_0, %c0_1] : memref<1x8x32xf32, #tpu.memory_space<vmem>>, vector<1x8x32xf32>
    %3 = vector.shape_cast %2 : vector<1x8x32xf32> to vector<8x32xf32>
    %c0_2 = arith.constant 0 : index
    %4 = arith.index_cast %1 : i32 to index
    %c0_3 = arith.constant 0 : index
    %5 = vector.load %arg2[%c0_2, %4, %c0_3] : memref<1x8x32xf32, #tpu.memory_space<vmem>>, vector<1x8x32xf32>
    %6 = vector.shape_cast %5 : vector<1x8x32xf32> to vector<8x32xf32>
    %c0_4 = arith.constant 0 : index
    %c0_5 = arith.constant 0 : index
    %7 = vector.load %arg4[%c0_4, %c0_5] : memref<32x32xf32, #tpu.memory_space<vmem>>, vector<32x32xf32>
    %cst = arith.constant dense<0.000000e+00> : vector<8x32xf32>
    %8 = tpu.matmul %3, %7, %cst {dimension_numbers = #tpu.dot_dimension_numbers<[1], [0], [0], [1], [0, 0, 1, 1], [], []>, precision = #tpu.contract_precision<fp32>} : vector<8x32xf32>, vector<32x32xf32>, vector<8x32xf32> -> vector<8x32xf32>
    %9 = vector.extract_strided_slice %8 {offsets = [0, 0], sizes = [8, 16], strides = [1, 1]} : vector<8x32xf32> to vector<8x16xf32>
    %10 = vector.extract_strided_slice %8 {offsets = [0, 16], sizes = [8, 16], strides = [1, 1]} : vector<8x32xf32> to vector<8x16xf32>
    %c0_6 = arith.constant 0 : index
    %c0_7 = arith.constant 0 : index
    %11 = vector.load %arg3[%c0_6, %c0_7] : memref<32x16xf32, #tpu.memory_space<vmem>>, vector<32x16xf32>
    %cst_8 = arith.constant dense<0.000000e+00> : vector<8x16xf32>
    %12 = tpu.matmul %6, %11, %cst_8 {dimension_numbers = #tpu.dot_dimension_numbers<[1], [0], [0], [1], [0, 0, 1, 1], [], []>, precision = #tpu.contract_precision<fp32>} : vector<8x32xf32>, vector<32x16xf32>, vector<8x16xf32> -> vector<8x16xf32>
    %cst_9 = arith.constant dense<0.000000e+00> : vector<8x8xf32>
    %13 = tpu.matmul %12, %9, %cst_9 {dimension_numbers = #tpu.dot_dimension_numbers<[1], [1], [0], [0], [0, 0, 1, 0], [], []>, precision = #tpu.contract_precision<fp32>} : vector<8x16xf32>, vector<8x16xf32>, vector<8x8xf32> -> vector<8x8xf32>
    %14 = tpu.iota {dimensions = array<i32: 0>} : vector<8x8xi32>
    %15 = vector.broadcast %1 : i32 to vector<8x8xi32>
    %16 = arith.addi %15, %14 : vector<8x8xi32>
    %17 = tpu.iota {dimensions = array<i32: 1>} : vector<8x8xi32>
    %18 = arith.cmpi sle, %17, %16 : vector<8x8xi32>
    %cst_10 = arith.constant -1.000000e+30 : f32
    %19 = vector.broadcast %cst_10 : f32 to vector<8x8xf32>
    %20 = arith.select %18, %13, %19 : vector<8x8xi1>, vector<8x8xf32>
    %cst_11 = arith.constant dense<0xFF800000> : vector<8xf32>
    %21 = vector.multi_reduction <maximumf>, %20, %cst_11 [1] : vector<8x8xf32> to vector<8xf32>
    %22 = vector.shape_cast %21 : vector<8xf32> to vector<8x1xf32>
    %23 = vector.broadcast %22 : vector<8x1xf32> to vector<8x8xf32>
    %24 = arith.subf %20, %23 : vector<8x8xf32>
    %25 = math.exp %24 : vector<8x8xf32>
    %cst_12 = arith.constant dense<0.000000e+00> : vector<8xf32>
    %26 = vector.multi_reduction <add>, %25, %cst_12 [1] : vector<8x8xf32> to vector<8xf32>
    %27 = vector.shape_cast %26 : vector<8xf32> to vector<8x1xf32>
    %cst_13 = arith.constant dense<0.000000e+00> : vector<8x16xf32>
    %28 = tpu.matmul %25, %10, %cst_13 {dimension_numbers = #tpu.dot_dimension_numbers<[1], [0], [0], [1], [0, 0, 1, 1], [], []>, precision = #tpu.contract_precision<fp32>} : vector<8x8xf32>, vector<8x16xf32>, vector<8x16xf32> -> vector<8x16xf32>
    %29 = vector.broadcast %27 : vector<8x1xf32> to vector<8x16xf32>
    %30 = arith.divf %28, %29 : vector<8x16xf32>
    %c0_14 = arith.constant 0 : index
    %c0_15 = arith.constant 0 : index
    %c0_16 = arith.constant 0 : index
    %31 = vector.load %arg5[%c0_14, %c0_15, %c0_16] : memref<1x8x16xf32, #tpu.memory_space<vmem>>, vector<1x8x16xf32>
    %32 = vector.shape_cast %31 : vector<1x8x16xf32> to vector<8x16xf32>
    %33 = vector.shape_cast %30 : vector<8x16xf32> to vector<1x8x16xf32>
    tpu.vector_store %arg5[%c0_14, %c0_15, %c0_16], %33 {strides = array<i32>} : memref<1x8x16xf32, #tpu.memory_space<vmem>>, vector<1x8x16xf32>,
    return
  }
  func.func @transform_0(%arg0: i32, %arg1: i32) -> (i32, i32, i32) {
    %c0_i32 = arith.constant 0 : i32
    %c0_i32_0 = arith.constant 0 : i32
    %c0_i32_1 = arith.constant 0 : i32
    return %arg0, %c0_i32, %c0_i32_0 : i32, i32, i32
  }
  func.func @transform_1(%arg0: i32, %arg1: i32) -> (i32, i32) {
    %c0_i32 = arith.constant 0 : i32
    %c0_i32_0 = arith.constant 0 : i32
    %c0_i32_1 = arith.constant 0 : i32
    return %c0_i32, %c0_i32_0 : i32, i32
  }
  func.func @transform_2(%arg0: i32, %arg1: i32) -> (i32, i32) {
    %c0_i32 = arith.constant 0 : i32
    %c0_i32_0 = arith.constant 0 : i32
    %c0_i32_1 = arith.constant 0 : i32
    return %c0_i32, %c0_i32_0 : i32, i32
  }
  func.func @transform_3(%arg0: i32, %arg1: i32) -> (i32, i32, i32) {
    %c0_i32 = arith.constant 0 : i32
    %c0_i32_0 = arith.constant 0 : i32
    return %arg0, %arg1, %c0_i32 : i32, i32, i32
  }
}

</mosaic_0001>

<llo_original>
// kernel: tpu_custom_call.1
$region0: #{tpu_custom_call.1}
  #allocation0 [shape = 'u32[]', space=smem, size = 0x4, offset = 0x4, fixed_abs, tag = 'smem constant byte address 0x4 - core index']
  #allocation1 [shape = 'u32[144,128]{1,0:T(1,128)}', space=vmem, size = 0x12000, scoped, tag = 'internal scratch']
  %s0 = inlined_call_operand.vmem [shape: f32[2,8,32], index: 0, kind: input, shape index: {}]
  %s1 = inlined_call_operand.vmem [shape: f32[32,16], index: 1, kind: input, shape index: {}]
  %s2 = inlined_call_operand.vmem [shape: f32[32,32], index: 2, kind: input, shape index: {}]
  %s3 = inlined_call_operand.hbm [shape: f32[2,8,16], index: 3, kind: output, shape index: {}]
  %s4 = sld [smem:[#allocation0]]
  $region45: #{tpu_custom_call.1} parent=0
    _
  %s6 = ssub.s32 1, %s4
  %s7 = scalar_select 0, %s6, %s4
  $region1: #{tpu_custom_call.1} parent=0
    #allocation2 [shape = 'u8[8192]{0}', space=vmem, size = 0x2000, scoped, tag = 'output window, operand 0']
    #allocation3 [shape = 's32[2]{0}', space=sflag, size = 0x8, scoped, tag = 'scoped memory for tpu_custom_call.1']
    %8 = vsyncpa [#allocation3], 0
    %s9 = scalar_lea.sflag [#allocation3], 1
    %10 = vsyncpa %s9, 0
    loop: start=0, step=1, limit=4
    $region2: #{tpu_custom_call.1} parent=1 // loop_pre_header
      _
    $region3: #{tpu_custom_call.1} parent=1 // loop_header
      %s12 = sphi 0, %s16
      %p13 = scmp.ge.s32.totalorder %s12, 4
      %s19 = sphi 0, %s31
      %s20 = sphi 0, %s27
      %s21 = sphi 0, %s19
      %s22 = sphi 0, %s20
      %s23 = sphi 0, %s21
      %s24 = sphi 0, %s22
      %s34 = sphi 0, %s36
      %s37 = sphi 0, %s34
      %s38 = sphi 0, %s37
      %s54 = sphi 0, %s38
      %s58 = sphi 0, %s58
      %s60 = sphi 0, %s58
      %s61 = sphi 0, %s60
      %s75 = sphi 0, %s61
      %s79 = sphi 0, %s79
      %s81 = sphi 0, %s79
      %s82 = sphi 0, %s81
      %s96 = sphi 0, %s82
      %s104 = sphi 0, %s106
      %s107 = sphi 0, %s104
      %s108 = sphi 0, %s107
      %s124 = sphi 0, %s108
    $region4: #{tpu_custom_call.1} parent=1 // loop_header_branch
      %15 = sbr.rel (%p13) target = $region8
    $region5: #{tpu_custom_call.1} parent=1 // loop_body
      %s17 = ssub.s32 %s12, 1
      %s18 = ssub.s32 %s12, 2
      %s25 = sadd.s32 1, %s20
      %p26 = scmp.ge.s32.totalorder %s25, 1
      %s27 = scalar_select %p26, 0, %s25
      %s28 = sadd.s32 1, %s19
      %s29 = scalar_select %p26, %s28, %s19
      %p30 = scmp.ge.s32.totalorder %s29, 2
      %s31 = scalar_select %p30, 0, %s29
      %s32 = ssub.s32 %s19, %s31
      %p33 = scmp.eq.s32.totalorder %s32, 0
      %s35 = sadd.s32 %s34, 1
      %s36 = scalar_select %p33, %s34, %s35
      %p39 = pneg %p33
      %p40 = scmp.eq.s32.totalorder %s12, 1
      %p41 = por %p39, %p40
      %p42 = scmp.ne.s32.totalorder %s34, %s37
      %p43 = scmp.eq.s32.totalorder %s12, 0
      %p44 = por %p42, %p43
      %p45 = scmp.ne.s32.totalorder %s34, %s37
      %p46 = scmp.eq.s32.totalorder %s17, 1
      %p47 = por %p45, %p46
      %p48 = scmp.ne.s32.totalorder %s37, %s38
      %p49 = scmp.eq.s32.totalorder %s17, 0
      %p50 = por %p48, %p49
      %p51 = scmp.ne.s32.totalorder %s37, %s38
      %p52 = scmp.eq.s32.totalorder %s18, 1
      %p53 = por %p51, %p52
      %p55 = scmp.ne.s32.totalorder %s38, %s54
      %p56 = scmp.eq.s32.totalorder %s18, 0
      %p57 = por %p55, %p56
      %s59 = sadd.s32 %s58, 1
      %p62 = scmp.eq.s32.totalorder %s12, 1
      %p63 = scmp.ne.s32.totalorder %s58, %s60
      %p64 = scmp.eq.s32.totalorder %s12, 0
      %p65 = por %p63, %p64
      %p66 = scmp.ne.s32.totalorder %s58, %s60
      %p67 = scmp.eq.s32.totalorder %s17, 1
      %p68 = por %p66, %p67
      %p69 = scmp.ne.s32.totalorder %s60, %s61
      %p70 = scmp.eq.s32.totalorder %s17, 0
      %p71 = por %p69, %p70
      %p72 = scmp.ne.s32.totalorder %s60, %s61
      %p73 = scmp.eq.s32.totalorder %s18, 1
      %p74 = por %p72, %p73
      %p76 = scmp.ne.s32.totalorder %s61, %s75
      %p77 = scmp.eq.s32.totalorder %s18, 0
      %p78 = por %p76, %p77
      %s80 = sadd.s32 %s79, 1
      %p83 = scmp.eq.s32.totalorder %s12, 1
      %p84 = scmp.ne.s32.totalorder %s79, %s81
      %p85 = scmp.eq.s32.totalorder %s12, 0
      %p86 = por %p84, %p85
      %p87 = scmp.ne.s32.totalorder %s79, %s81
      %p88 = scmp.eq.s32.totalorder %s17, 1
      %p89 = por %p87, %p88
      %p90 = scmp.ne.s32.totalorder %s81, %s82
      %p91 = scmp.eq.s32.totalorder %s17, 0
      %p92 = por %p90, %p91
      %p93 = scmp.ne.s32.totalorder %s81, %s82
      %p94 = scmp.eq.s32.totalorder %s18, 1
      %p95 = por %p93, %p94
      %p97 = scmp.ne.s32.totalorder %s82, %s96
      %p98 = scmp.eq.s32.totalorder %s18, 0
      %p99 = por %p97, %p98
      %s100 = ssub.s32 %s19, %s31
      %s101 = ssub.s32 %s20, %s27
      %s102 = sor.u32 %s100, %s101
      %p103 = scmp.eq.s32.totalorder %s102, 0
      %s105 = sadd.s32 %s104, 1
      %s106 = scalar_select %p103, %s104, %s105
      %p109 = pneg %p103
      %p110 = scmp.eq.s32.totalorder %s12, 1
      %p111 = por %p109, %p110
      %p112 = scmp.ne.s32.totalorder %s104, %s107
      %p113 = scmp.eq.s32.totalorder %s12, 0
      %p114 = por %p112, %p113
      %p115 = scmp.ne.s32.totalorder %s104, %s107
      %p116 = scmp.eq.s32.totalorder %s17, 1
      %p117 = por %p115, %p116
      %p118 = scmp.ne.s32.totalorder %s107, %s108
      %p119 = scmp.eq.s32.totalorder %s17, 0
      %p120 = por %p118, %p119
      %p121 = scmp.ne.s32.totalorder %s107, %s108
      %p122 = scmp.eq.s32.totalorder %s18, 1
      %p123 = por %p121, %p122
      %p125 = scmp.ne.s32.totalorder %s108, %s124
      %p126 = scmp.eq.s32.totalorder %s18, 0
      %p127 = por %p125, %p126
      %p128 = scmp.le.s32.totalorder 1, %s12
      %p129 = scmp.lt.s32.totalorder %s12, 3
      %p130 = pnand %p128, %p129
      %p131 = pneg %p130
      // Predicated region
      $region9: #{tpu_custom_call.1} parent=5 // pred_check
        _
      $region10: #{tpu_custom_call.1} parent=5 // pred_check_branch
        %133 = sbr.rel (%p130) target = $region12
      $region11: #{tpu_custom_call.1} parent=5 // pred_region
        %s134 = ssub.s32 %s12, 1
        // Predicated region
        $region13: #{tpu_custom_call.1} parent=11 // pred_check
          %p135 = pneg %p71
        $region14: #{tpu_custom_call.1} parent=11 // pred_check_branch
          %137 = sbr.rel (%p135) target = $region16
        $region15: #{tpu_custom_call.1} parent=11 // pred_region
          _
        $region16: #{tpu_custom_call.1} parent=11 // pred_fallthru
          _
        // Predicated region
        $region17: #{tpu_custom_call.1} parent=11 // pred_check
          %p138 = pneg %p92
        $region18: #{tpu_custom_call.1} parent=11 // pred_check_branch
          %140 = sbr.rel (%p138) target = $region20
        $region19: #{tpu_custom_call.1} parent=11 // pred_region
          _
        $region20: #{tpu_custom_call.1} parent=11 // pred_fallthru
          _
      $region12: #{tpu_custom_call.1} parent=5 // pred_fallthru
        _
      %p141 = scmp.lt.s32.totalorder %s12, 2
      // Predicated region
      $region21: #{tpu_custom_call.1} parent=5 // pred_check
        %p142 = pneg %p141
      $region22: #{tpu_custom_call.1} parent=5 // pred_check_branch
        %144 = sbr.rel (%p142) target = $region24
      $region23: #{tpu_custom_call.1} parent=5 // pred_region
        // Predicated region
        $region25: #{tpu_custom_call.1} parent=23 // pred_check
          %p145 = pneg %p44
        $region26: #{tpu_custom_call.1} parent=23 // pred_check_branch
          %147 = sbr.rel (%p145) target = $region28
        $region27: #{tpu_custom_call.1} parent=23 // pred_region
          %p148 = scmp.lt.s32.totalorder %s19, 1
          %s149 = scalar_select %p148, %s19, 1
          %s150 = smul.addr %s149, 8
          %s151 = scalar_lea.vmem %s0, %s150
        $region28: #{tpu_custom_call.1} parent=23 // pred_fallthru
          _
      $region24: #{tpu_custom_call.1} parent=5 // pred_fallthru
        _
      %p152 = scmp.le.s32.totalorder 1, %s12
      %p153 = scmp.lt.s32.totalorder %s12, 3
      %p154 = pnand %p152, %p153
      %p155 = pneg %p154
      // Predicated region
      $region29: #{tpu_custom_call.1} parent=5 // pred_check
        _
      $region30: #{tpu_custom_call.1} parent=5 // pred_check_branch
        %157 = sbr.rel (%p154) target = $region32
      $region31: #{tpu_custom_call.1} parent=5 // pred_region
        %s158 = ssub.s32 %s12, 1
        %p159 = scmp.lt.s32.totalorder %s21, 1
        %s160 = scalar_select %p159, %s21, 1
        %s161 = smul.addr %s160, 8
        %s162 = scalar_lea.vmem %s0, %s161
        %p163 = pneg %p50
        %p164 = pneg %p47
        %p165 = pneg %p71
        %p166 = pneg %p68
        %p167 = pneg %p92
        %p168 = pneg %p89
        %p169 = pneg %p120
        %p170 = pneg %p117
        %s171 = sand.u32 %s107, 1
        %s172 = scalar_lea.sflag [#allocation3], %s171
        %s173 = sand.u32 %s107, 1
        %s174 = smul.addr %s173, 8
        %s175 = scalar_lea.vmem [#allocation2], %s174
        %p176 = scmp.lt.s32.totalorder %s21, 1
        %s177 = scalar_select %p176, %s21, 1
        %s178 = smul.addr %s177, 8
        %s179 = scalar_lea.vmem %s0, %s178
        %s180 = smul.u32 %s22, 8
        %v181 = vld [vmem:[%s179] sm:$0xff]
        %s182 = scalar_lea.vmem %s179, %s180
        %v183 = vld [vmem:[%s182] sm:$0xff]
        %v184 = vld [vmem:[%s2] sm:$0xff]
        %v185 = vld [vmem:[%s2 + $0x8] sm:$0xff]
        %v186 = vld [vmem:[%s2 + $0x10] sm:$0xff]
        %v187 = vld [vmem:[%s2 + $0x18] sm:$0xff]
        %vm188 = vcmask 261120
        %v190 = vsel %vm188, %v181, 0
        %192 = vmatprep.subr.mxu0 0.0
        %v193 = vand.u32 %v184, 4294901760
        %194 = vmatpush1.msra.mxu0 %v193
        %195 = vmatprep.subr.mxu0 0.0
        %v196 = vand.u32 %v185, 4294901760
        %197 = vmatpush1.msra.mxu0 %v196
        %198 = vmatprep.subr.mxu0 0.0
        %v199 = vand.u32 %v186, 4294901760
        %200 = vmatpush1.msra.mxu0 %v199
        %201 = vmatprep.subr.mxu0 0.0
        %v202 = vand.u32 %v187, 4294901760
        %203 = vmatpush1.msra.mxu0 %v202
        %204 = vmatprep.subr.mxu0 0.0
        %205 = vmatpush1.msra.mxu0 0.0
        %206 = vmatprep.subr.mxu0 0.0
        %207 = vmatpush1.msra.mxu0 0.0
        %208 = vmatprep.subr.mxu0 0.0
        %209 = vmatpush1.msra.mxu0 0.0
        %210 = vmatprep.subr.mxu0 0.0
        %211 = vmatpush1.msra.mxu0 0.0
        %212 = vmatprep.subr.mxu0 0.0
        %213 = vmatpush1.msra.mxu0 0.0
        %214 = vmatprep.subr.mxu0 0.0
        %215 = vmatpush1.msra.mxu0 0.0
        %216 = vmatprep.subr.mxu0 0.0
        %217 = vmatpush1.msra.mxu0 0.0
        %218 = vmatprep.subr.mxu0 0.0
        %219 = vmatpush1.msra.mxu0 0.0
        %220 = vmatprep.subr.mxu0 0.0
        %221 = vmatpush1.msra.mxu0 0.0
        %222 = vmatprep.subr.mxu0 0.0
        %223 = vmatpush1.msra.mxu0 0.0
        %224 = vmatprep.subr.mxu0 0.0
        %225 = vmatpush1.msra.mxu0 0.0
        %226 = vmatprep.subr.mxu0 0.0
        %227 = vmatpush1.msra.mxu0 0.0
        %228 = vmatprep.subr.mxu0 0.0
        %229 = vmatpush1.msra.mxu0 0.0
        %230 = vmatprep.subr.mxu0 0.0
        %231 = vmatpush1.msra.mxu0 0.0
        %232 = vmatprep.subr.mxu0 0.0
        %233 = vmatpush1.msra.mxu0 0.0
        %234 = vmatprep.subr.mxu0 0.0
        %235 = vmatpush1.msra.mxu0 0.0
        %236 = vmatprep.subr.mxu0 0.0
        %237 = vmatpush1.msra.mxu0 0.0
        %238 = vmatprep.subr.mxu0 0.0
        %239 = vmatpush1.msra.mxu0 0.0
        %240 = vmatprep.subr.mxu0 0.0
        %241 = vmatpush1.msra.mxu0 0.0
        %242 = vmatprep.subr.mxu0 0.0
        %243 = vmatpush1.msra.mxu0 0.0
        %244 = vmatprep.subr.mxu0 0.0
        %245 = vmatpush1.msra.mxu0 0.0
        %246 = vmatprep.subr.mxu0 0.0
        %247 = vmatpush1.msra.mxu0 0.0
        %248 = vmatprep.subr.mxu0 0.0
        %249 = vmatpush1.msra.mxu0 0.0
        %250 = vmatprep.subr.mxu0 0.0
        %251 = vmatpush1.msra.mxu0 0.0
        %252 = vmatprep.subr.mxu0 0.0
        %253 = vmatpush1.msra.mxu0 0.0
        %254 = vmatprep.subr.mxu0 0.0
        %255 = vmatpush1.msra.mxu0 0.0
        %256 = vmatprep.subr.mxu0 0.0
        %257 = vmatpush1.msra.mxu0 0.0
        %258 = vmatprep.subr.mxu0 0.0
        %259 = vmatpush1.msra.mxu0 0.0
        %260 = vmatprep.mubr.f32.mxu0 0.0
        %v261 = vand.u32 %v190, 4294901760
        %v262 = vsub.f32 %v190, %v261
        %v263 = vand.u32 %v262, 4294901760
        %v264 = vsub.f32 %v262, %v263
        %v265 = vand.u32 %v264, 4294901760
        %266 = vmatmul.mubr.f32.gmra.mrb[0].mxu0 %v265
        %v267 = vpop.f32.mrb[0].mxu0
        %v268 = vadd.f32 0.0, %v267
        %v269 = vpop.f32.mrb[0].mxu0
        %270 = vdwg.mxu0
        %271 = vmatprep.subr.mxu0 0.0
        %v272 = vand.u32 %v184, 4294901760
        %v273 = vsub.f32 %v184, %v272
        %v274 = vand.u32 %v273, 4294901760
        %v275 = vsub.f32 %v273, %v274
        %v276 = vand.u32 %v275, 4294901760
        %277 = vmatpush1.msra.mxu0 %v276
        %278 = vmatprep.subr.mxu0 0.0
        %v279 = vand.u32 %v185, 4294901760
        %v280 = vsub.f32 %v185, %v279
        %v281 = vand.u32 %v280, 4294901760
        %v282 = vsub.f32 %v280, %v281
        %v283 = vand.u32 %v282, 4294901760
        %284 = vmatpush1.msra.mxu0 %v283
        %285 = vmatprep.subr.mxu0 0.0
        %v286 = vand.u32 %v186, 4294901760
        %v287 = vsub.f32 %v186, %v286
        %v288 = vand.u32 %v287, 4294901760
        %v289 = vsub.f32 %v287, %v288
        %v290 = vand.u32 %v289, 4294901760
        %291 = vmatpush1.msra.mxu0 %v290
        %292 = vmatprep.subr.mxu0 0.0
        %v293 = vand.u32 %v187, 4294901760
        %v294 = vsub.f32 %v187, %v293
        %v295 = vand.u32 %v294, 4294901760
        %v296 = vsub.f32 %v294, %v295
        %v297 = vand.u32 %v296, 4294901760
        %298 = vmatpush1.msra.mxu0 %v297
        %299 = vmatprep.subr.mxu0 0.0
        %300 = vmatpush1.msra.mxu0 0.0
        %301 = vmatprep.subr.mxu0 0.0
        %302 = vmatpush1.msra.mxu0 0.0
        %303 = vmatprep.subr.mxu0 0.0
        %304 = vmatpush1.msra.mxu0 0.0
        %305 = vmatprep.subr.mxu0 0.0
        %306 = vmatpush1.msra.mxu0 0.0
        %307 = vmatprep.subr.mxu0 0.0
        %308 = vmatpush1.msra.mxu0 0.0
        %309 = vmatprep.subr.mxu0 0.0
        %310 = vmatpush1.msra.mxu0 0.0
        %311 = vmatprep.subr.mxu0 0.0
        %312 = vmatpush1.msra.mxu0 0.0
        %313 = vmatprep.subr.mxu0 0.0
        %314 = vmatpush1.msra.mxu0 0.0
        %315 = vmatprep.subr.mxu0 0.0
        %316 = vmatpush1.msra.mxu0 0.0
        %317 = vmatprep.subr.mxu0 0.0
        %318 = vmatpush1.msra.mxu0 0.0
        %319 = vmatprep.subr.mxu0 0.0
        %320 = vmatpush1.msra.mxu0 0.0
        %321 = vmatprep.subr.mxu0 0.0
        %322 = vmatpush1.msra.mxu0 0.0
        %323 = vmatprep.subr.mxu0 0.0
        %324 = vmatpush1.msra.mxu0 0.0
        %325 = vmatprep.subr.mxu0 0.0
        %326 = vmatpush1.msra.mxu0 0.0
        %327 = vmatprep.subr.mxu0 0.0
        %328 = vmatpush1.msra.mxu0 0.0
        %329 = vmatprep.subr.mxu0 0.0
        %330 = vmatpush1.msra.mxu0 0.0
        %331 = vmatprep.subr.mxu0 0.0
        %332 = vmatpush1.msra.mxu0 0.0
        %333 = vmatprep.subr.mxu0 0.0
        %334 = vmatpush1.msra.mxu0 0.0
        %335 = vmatprep.subr.mxu0 0.0
        %336 = vmatpush1.msra.mxu0 0.0
        %337 = vmatprep.subr.mxu0 0.0
        %338 = vmatpush1.msra.mxu0 0.0
        %339 = vmatprep.subr.mxu0 0.0
        %340 = vmatpush1.msra.mxu0 0.0
        %341 = vmatprep.subr.mxu0 0.0
        %342 = vmatpush1.msra.mxu0 0.0
        %343 = vmatprep.subr.mxu0 0.0
        %344 = vmatpush1.msra.mxu0 0.0
        %345 = vmatprep.subr.mxu0 0.0
        %346 = vmatpush1.msra.mxu0 0.0
        %347 = vmatprep.subr.mxu0 0.0
        %348 = vmatpush1.msra.mxu0 0.0
        %349 = vmatprep.subr.mxu0 0.0
        %350 = vmatpush1.msra.mxu0 0.0
        %351 = vmatprep.subr.mxu0 0.0
        %352 = vmatpush1.msra.mxu0 0.0
        %353 = vmatprep.subr.mxu0 0.0
        %354 = vmatpush1.msra.mxu0 0.0
        %355 = vmatprep.mubr.f32.mxu0 0.0
        %v356 = vand.u32 %v190, 4294901760
        %357 = vmatmul.mubr.f32.gmra.mrb[0].mxu0 %v356
        %v358 = vpop.f32.mrb[0].mxu0
        %v359 = vadd.f32 %v268, %v358
        %v360 = vpop.f32.mrb[0].mxu0
        %361 = vdwg.mxu0
        %362 = vmatprep.subr.mxu0 0.0
        %v363 = vand.u32 %v184, 4294901760
        %v364 = vsub.f32 %v184, %v363
        %365 = vmatpush1.msra.mxu0 %v364
        %366 = vmatprep.subr.mxu0 0.0
        %v367 = vand.u32 %v185, 4294901760
        %v368 = vsub.f32 %v185, %v367
        %369 = vmatpush1.msra.mxu0 %v368
        %370 = vmatprep.subr.mxu0 0.0
        %v371 = vand.u32 %v186, 4294901760
        %v372 = vsub.f32 %v186, %v371
        %373 = vmatpush1.msra.mxu0 %v372
        %374 = vmatprep.subr.mxu0 0.0
        %v375 = vand.u32 %v187, 4294901760
        %v376 = vsub.f32 %v187, %v375
        %377 = vmatpush1.msra.mxu0 %v376
        %378 = vmatprep.subr.mxu0 0.0
        %379 = vmatpush1.msra.mxu0 0.0
        %380 = vmatprep.subr.mxu0 0.0
        %381 = vmatpush1.msra.mxu0 0.0
        %382 = vmatprep.subr.mxu0 0.0
        %383 = vmatpush1.msra.mxu0 0.0
        %384 = vmatprep.subr.mxu0 0.0
        %385 = vmatpush1.msra.mxu0 0.0
        %386 = vmatprep.subr.mxu0 0.0
        %387 = vmatpush1.msra.mxu0 0.0
        %388 = vmatprep.subr.mxu0 0.0
        %389 = vmatpush1.msra.mxu0 0.0
        %390 = vmatprep.subr.mxu0 0.0
        %391 = vmatpush1.msra.mxu0 0.0
        %392 = vmatprep.subr.mxu0 0.0
        %393 = vmatpush1.msra.mxu0 0.0
        %394 = vmatprep.subr.mxu0 0.0
        %395 = vmatpush1.msra.mxu0 0.0
        %396 = vmatprep.subr.mxu0 0.0
        %397 = vmatpush1.msra.mxu0 0.0
        %398 = vmatprep.subr.mxu0 0.0
        %399 = vmatpush1.msra.mxu0 0.0
        %400 = vmatprep.subr.mxu0 0.0
        %401 = vmatpush1.msra.mxu0 0.0
        %402 = vmatprep.subr.mxu0 0.0
        %403 = vmatpush1.msra.mxu0 0.0
        %404 = vmatprep.subr.mxu0 0.0
        %405 = vmatpush1.msra.mxu0 0.0
        %406 = vmatprep.subr.mxu0 0.0
        %407 = vmatpush1.msra.mxu0 0.0
        %408 = vmatprep.subr.mxu0 0.0
        %409 = vmatpush1.msra.mxu0 0.0
        %410 = vmatprep.subr.mxu0 0.0
        %411 = vmatpush1.msra.mxu0 0.0
        %412 = vmatprep.subr.mxu0 0.0
        %413 = vmatpush1.msra.mxu0 0.0
        %414 = vmatprep.subr.mxu0 0.0
        %415 = vmatpush1.msra.mxu0 0.0
        %416 = vmatprep.subr.mxu0 0.0
        %417 = vmatpush1.msra.mxu0 0.0
        %418 = vmatprep.subr.mxu0 0.0
        %419 = vmatpush1.msra.mxu0 0.0
        %420 = vmatprep.subr.mxu0 0.0
        %421 = vmatpush1.msra.mxu0 0.0
        %422 = vmatprep.subr.mxu0 0.0
        %423 = vmatpush1.msra.mxu0 0.0
        %424 = vmatprep.subr.mxu0 0.0
        %425 = vmatpush1.msra.mxu0 0.0
        %426 = vmatprep.subr.mxu0 0.0
        %427 = vmatpush1.msra.mxu0 0.0
        %428 = vmatprep.subr.mxu0 0.0
        %429 = vmatpush1.msra.mxu0 0.0
        %430 = vmatprep.subr.mxu0 0.0
        %431 = vmatpush1.msra.mxu0 0.0
        %432 = vmatprep.subr.mxu0 0.0
        %433 = vmatpush1.msra.mxu0 0.0
        %434 = vmatprep.mubr.f32.mxu0 0.0
        %v435 = vand.u32 %v190, 4294901760
        %v436 = vsub.f32 %v190, %v435
        %437 = vmatmul.mubr.f32.gmra.mrb[0].mxu0 %v436
        %v438 = vpop.f32.mrb[0].mxu0
        %v439 = vadd.f32 %v359, %v438
        %v440 = vpop.f32.mrb[0].mxu0
        %441 = vdwg.mxu0
        %442 = vmatprep.subr.mxu0 0.0
        %v443 = vand.u32 %v184, 4294901760
        %444 = vmatpush1.msra.mxu0 %v443
        %445 = vmatprep.subr.mxu0 0.0
        %v446 = vand.u32 %v185, 4294901760
        %447 = vmatpush1.msra.mxu0 %v446
        %448 = vmatprep.subr.mxu0 0.0
        %v449 = vand.u32 %v186, 4294901760
        %450 = vmatpush1.msra.mxu0 %v449
        %451 = vmatprep.subr.mxu0 0.0
        %v452 = vand.u32 %v187, 4294901760
        %453 = vmatpush1.msra.mxu0 %v452
        %454 = vmatprep.subr.mxu0 0.0
        %455 = vmatpush1.msra.mxu0 0.0
        %456 = vmatprep.subr.mxu0 0.0
        %457 = vmatpush1.msra.mxu0 0.0
        %458 = vmatprep.subr.mxu0 0.0
        %459 = vmatpush1.msra.mxu0 0.0
        %460 = vmatprep.subr.mxu0 0.0
        %461 = vmatpush1.msra.mxu0 0.0
        %462 = vmatprep.subr.mxu0 0.0
        %463 = vmatpush1.msra.mxu0 0.0
        %464 = vmatprep.subr.mxu0 0.0
        %465 = vmatpush1.msra.mxu0 0.0
        %466 = vmatprep.subr.mxu0 0.0
        %467 = vmatpush1.msra.mxu0 0.0
        %468 = vmatprep.subr.mxu0 0.0
        %469 = vmatpush1.msra.mxu0 0.0
        %470 = vmatprep.subr.mxu0 0.0
        %471 = vmatpush1.msra.mxu0 0.0
        %472 = vmatprep.subr.mxu0 0.0
        %473 = vmatpush1.msra.mxu0 0.0
        %474 = vmatprep.subr.mxu0 0.0
        %475 = vmatpush1.msra.mxu0 0.0
        %476 = vmatprep.subr.mxu0 0.0
        %477 = vmatpush1.msra.mxu0 0.0
        %478 = vmatprep.subr.mxu0 0.0
        %479 = vmatpush1.msra.mxu0 0.0
        %480 = vmatprep.subr.mxu0 0.0
        %481 = vmatpush1.msra.mxu0 0.0
        %482 = vmatprep.subr.mxu0 0.0
        %483 = vmatpush1.msra.mxu0 0.0
        %484 = vmatprep.subr.mxu0 0.0
        %485 = vmatpush1.msra.mxu0 0.0
        %486 = vmatprep.subr.mxu0 0.0
        %487 = vmatpush1.msra.mxu0 0.0
        %488 = vmatprep.subr.mxu0 0.0
        %489 = vmatpush1.msra.mxu0 0.0
        %490 = vmatprep.subr.mxu0 0.0
        %491 = vmatpush1.msra.mxu0 0.0
        %492 = vmatprep.subr.mxu0 0.0
        %493 = vmatpush1.msra.mxu0 0.0
        %494 = vmatprep.subr.mxu0 0.0
        %495 = vmatpush1.msra.mxu0 0.0
        %496 = vmatprep.subr.mxu0 0.0
        %497 = vmatpush1.msra.mxu0 0.0
        %498 = vmatprep.subr.mxu0 0.0
        %499 = vmatpush1.msra.mxu0 0.0
        %500 = vmatprep.subr.mxu0 0.0
        %501 = vmatpush1.msra.mxu0 0.0
        %502 = vmatprep.subr.mxu0 0.0
        %503 = vmatpush1.msra.mxu0 0.0
        %504 = vmatprep.subr.mxu0 0.0
        %505 = vmatpush1.msra.mxu0 0.0
        %506 = vmatprep.subr.mxu0 0.0
        %507 = vmatpush1.msra.mxu0 0.0
        %508 = vmatprep.subr.mxu0 0.0
        %509 = vmatpush1.msra.mxu0 0.0
        %510 = vmatprep.mubr.f32.mxu0 0.0
        %v511 = vand.u32 %v190, 4294901760
        %v512 = vsub.f32 %v190, %v511
        %v513 = vand.u32 %v512, 4294901760
        %514 = vmatmul.mubr.f32.gmra.mrb[0].mxu0 %v513
        %v515 = vpop.f32.mrb[0].mxu0
        %v516 = vadd.f32 %v439, %v515
        %v517 = vpop.f32.mrb[0].mxu0
        %518 = vdwg.mxu0
        %519 = vmatprep.subr.mxu0 0.0
        %v520 = vand.u32 %v184, 4294901760
        %v521 = vsub.f32 %v184, %v520
        %v522 = vand.u32 %v521, 4294901760
        %523 = vmatpush1.msra.mxu0 %v522
        %524 = vmatprep.subr.mxu0 0.0
        %v525 = vand.u32 %v185, 4294901760
        %v526 = vsub.f32 %v185, %v525
        %v527 = vand.u32 %v526, 4294901760
        %528 = vmatpush1.msra.mxu0 %v527
        %529 = vmatprep.subr.mxu0 0.0
        %v530 = vand.u32 %v186, 4294901760
        %v531 = vsub.f32 %v186, %v530
        %v532 = vand.u32 %v531, 4294901760
        %533 = vmatpush1.msra.mxu0 %v532
        %534 = vmatprep.subr.mxu0 0.0
        %v535 = vand.u32 %v187, 4294901760
        %v536 = vsub.f32 %v187, %v535
        %v537 = vand.u32 %v536, 4294901760
        %538 = vmatpush1.msra.mxu0 %v537
        %539 = vmatprep.subr.mxu0 0.0
        %540 = vmatpush1.msra.mxu0 0.0
        %541 = vmatprep.subr.mxu0 0.0
        %542 = vmatpush1.msra.mxu0 0.0
        %543 = vmatprep.subr.mxu0 0.0
        %544 = vmatpush1.msra.mxu0 0.0
        %545 = vmatprep.subr.mxu0 0.0
        %546 = vmatpush1.msra.mxu0 0.0
        %547 = vmatprep.subr.mxu0 0.0
        %548 = vmatpush1.msra.mxu0 0.0
        %549 = vmatprep.subr.mxu0 0.0
        %550 = vmatpush1.msra.mxu0 0.0
        %551 = vmatprep.subr.mxu0 0.0
        %552 = vmatpush1.msra.mxu0 0.0
        %553 = vmatprep.subr.mxu0 0.0
        %554 = vmatpush1.msra.mxu0 0.0
        %555 = vmatprep.subr.mxu0 0.0
        %556 = vmatpush1.msra.mxu0 0.0
        %557 = vmatprep.subr.mxu0 0.0
        %558 = vmatpush1.msra.mxu0 0.0
        %559 = vmatprep.subr.mxu0 0.0
        %560 = vmatpush1.msra.mxu0 0.0
        %561 = vmatprep.subr.mxu0 0.0
        %562 = vmatpush1.msra.mxu0 0.0
        %563 = vmatprep.subr.mxu0 0.0
        %564 = vmatpush1.msra.mxu0 0.0
        %565 = vmatprep.subr.mxu0 0.0
        %566 = vmatpush1.msra.mxu0 0.0
        %567 = vmatprep.subr.mxu0 0.0
        %568 = vmatpush1.msra.mxu0 0.0
        %569 = vmatprep.subr.mxu0 0.0
        %570 = vmatpush1.msra.mxu0 0.0
        %571 = vmatprep.subr.mxu0 0.0
        %572 = vmatpush1.msra.mxu0 0.0
        %573 = vmatprep.subr.mxu0 0.0
        %574 = vmatpush1.msra.mxu0 0.0
        %575 = vmatprep.subr.mxu0 0.0
        %576 = vmatpush1.msra.mxu0 0.0
        %577 = vmatprep.subr.mxu0 0.0
        %578 = vmatpush1.msra.mxu0 0.0
        %579 = vmatprep.subr.mxu0 0.0
        %580 = vmatpush1.msra.mxu0 0.0
        %581 = vmatprep.subr.mxu0 0.0
        %582 = vmatpush1.msra.mxu0 0.0
        %583 = vmatprep.subr.mxu0 0.0
        %584 = vmatpush1.msra.mxu0 0.0
        %585 = vmatprep.subr.mxu0 0.0
        %586 = vmatpush1.msra.mxu0 0.0
        %587 = vmatprep.subr.mxu0 0.0
        %588 = vmatpush1.msra.mxu0 0.0
        %589 = vmatprep.subr.mxu0 0.0
        %590 = vmatpush1.msra.mxu0 0.0
        %591 = vmatprep.subr.mxu0 0.0
        %592 = vmatpush1.msra.mxu0 0.0
        %593 = vmatprep.subr.mxu0 0.0
        %594 = vmatpush1.msra.mxu0 0.0
        %595 = vmatprep.mubr.f32.mxu0 0.0
        %v596 = vand.u32 %v190, 4294901760
        %597 = vmatmul.mubr.f32.gmra.mrb[0].mxu0 %v596
        %v598 = vpop.f32.mrb[0].mxu0
        %v599 = vadd.f32 %v516, %v598
        %v600 = vpop.f32.mrb[0].mxu0
        %601 = vdwg.mxu0
        %602 = vmatprep.subr.mxu0 0.0
        %v603 = vand.u32 %v184, 4294901760
        %604 = vmatpush1.msra.mxu0 %v603
        %605 = vmatprep.subr.mxu0 0.0
        %v606 = vand.u32 %v185, 4294901760
        %607 = vmatpush1.msra.mxu0 %v606
        %608 = vmatprep.subr.mxu0 0.0
        %v609 = vand.u32 %v186, 4294901760
        %610 = vmatpush1.msra.mxu0 %v609
        %611 = vmatprep.subr.mxu0 0.0
        %v612 = vand.u32 %v187, 4294901760
        %613 = vmatpush1.msra.mxu0 %v612
        %614 = vmatprep.subr.mxu0 0.0
        %615 = vmatpush1.msra.mxu0 0.0
        %616 = vmatprep.subr.mxu0 0.0
        %617 = vmatpush1.msra.mxu0 0.0
        %618 = vmatprep.subr.mxu0 0.0
        %619 = vmatpush1.msra.mxu0 0.0
        %620 = vmatprep.subr.mxu0 0.0
        %621 = vmatpush1.msra.mxu0 0.0
        %622 = vmatprep.subr.mxu0 0.0
        %623 = vmatpush1.msra.mxu0 0.0
        %624 = vmatprep.subr.mxu0 0.0
        %625 = vmatpush1.msra.mxu0 0.0
        %626 = vmatprep.subr.mxu0 0.0
        %627 = vmatpush1.msra.mxu0 0.0
        %628 = vmatprep.subr.mxu0 0.0
        %629 = vmatpush1.msra.mxu0 0.0
        %630 = vmatprep.subr.mxu0 0.0
        %631 = vmatpush1.msra.mxu0 0.0
        %632 = vmatprep.subr.mxu0 0.0
        %633 = vmatpush1.msra.mxu0 0.0
        %634 = vmatprep.subr.mxu0 0.0
        %635 = vmatpush1.msra.mxu0 0.0
        %636 = vmatprep.subr.mxu0 0.0
        %637 = vmatpush1.msra.mxu0 0.0
        %638 = vmatprep.subr.mxu0 0.0
        %639 = vmatpush1.msra.mxu0 0.0
        %640 = vmatprep.subr.mxu0 0.0
        %641 = vmatpush1.msra.mxu0 0.0
        %642 = vmatprep.subr.mxu0 0.0
        %643 = vmatpush1.msra.mxu0 0.0
        %644 = vmatprep.subr.mxu0 0.0
        %645 = vmatpush1.msra.mxu0 0.0
        %646 = vmatprep.subr.mxu0 0.0
        %647 = vmatpush1.msra.mxu0 0.0
        %648 = vmatprep.subr.mxu0 0.0
        %649 = vmatpush1.msra.mxu0 0.0
        %650 = vmatprep.subr.mxu0 0.0
        %651 = vmatpush1.msra.mxu0 0.0
        %652 = vmatprep.subr.mxu0 0.0
        %653 = vmatpush1.msra.mxu0 0.0
        %654 = vmatprep.subr.mxu0 0.0
        %655 = vmatpush1.msra.mxu0 0.0
        %656 = vmatprep.subr.mxu0 0.0
        %657 = vmatpush1.msra.mxu0 0.0
        %658 = vmatprep.subr.mxu0 0.0
        %659 = vmatpush1.msra.mxu0 0.0
        %660 = vmatprep.subr.mxu0 0.0
        %661 = vmatpush1.msra.mxu0 0.0
        %662 = vmatprep.subr.mxu0 0.0
        %663 = vmatpush1.msra.mxu0 0.0
        %664 = vmatprep.subr.mxu0 0.0
        %665 = vmatpush1.msra.mxu0 0.0
        %666 = vmatprep.subr.mxu0 0.0
        %667 = vmatpush1.msra.mxu0 0.0
        %668 = vmatprep.subr.mxu0 0.0
        %669 = vmatpush1.msra.mxu0 0.0
        %670 = vmatprep.mubr.f32.mxu0 0.0
        %v671 = vand.u32 %v190, 4294901760
        %672 = vmatmul.mubr.f32.gmra.mrb[0].mxu0 %v671
        %v673 = vpop.f32.mrb[0].mxu0
        %v674 = vadd.f32 %v599, %v673
        %v675 = vpop.f32.mrb[0].mxu0
        %676 = vdwg.mxu0
        %v677 = vld [vmem:[%s1] sm:$0xff]
        %v678 = vld [vmem:[%s1 + $0x8] sm:$0xff]
        %v679 = vld [vmem:[%s1 + $0x10] sm:$0xff]
        %v680 = vld [vmem:[%s1 + $0x18] sm:$0xff]
        %v682 = vsel %vm188, %v183, 0
        %684 = vmatprep.subr.mxu0 0.0
        %v685 = vand.u32 %v677, 4294901760
        %686 = vmatpush1.msra.mxu0 %v685
        %687 = vmatprep.subr.mxu0 0.0
        %v688 = vand.u32 %v678, 4294901760
        %689 = vmatpush1.msra.mxu0 %v688
        %690 = vmatprep.subr.mxu0 0.0
        %v691 = vand.u32 %v679, 4294901760
        %692 = vmatpush1.msra.mxu0 %v691
        %693 = vmatprep.subr.mxu0 0.0
        %v694 = vand.u32 %v680, 4294901760
        %695 = vmatpush1.msra.mxu0 %v694
        %696 = vmatprep.subr.mxu0 0.0
        %697 = vmatpush1.msra.mxu0 0.0
        %698 = vmatprep.subr.mxu0 0.0
        %699 = vmatpush1.msra.mxu0 0.0
        %700 = vmatprep.subr.mxu0 0.0
        %701 = vmatpush1.msra.mxu0 0.0
        %702 = vmatprep.subr.mxu0 0.0
        %703 = vmatpush1.msra.mxu0 0.0
        %704 = vmatprep.subr.mxu0 0.0
        %705 = vmatpush1.msra.mxu0 0.0
        %706 = vmatprep.subr.mxu0 0.0
        %707 = vmatpush1.msra.mxu0 0.0
        %708 = vmatprep.subr.mxu0 0.0
        %709 = vmatpush1.msra.mxu0 0.0
        %710 = vmatprep.subr.mxu0 0.0
        %711 = vmatpush1.msra.mxu0 0.0
        %712 = vmatprep.subr.mxu0 0.0
        %713 = vmatpush1.msra.mxu0 0.0
        %714 = vmatprep.subr.mxu0 0.0
        %715 = vmatpush1.msra.mxu0 0.0
        %716 = vmatprep.subr.mxu0 0.0
        %717 = vmatpush1.msra.mxu0 0.0
        %718 = vmatprep.subr.mxu0 0.0
        %719 = vmatpush1.msra.mxu0 0.0
        %720 = vmatprep.subr.mxu0 0.0
        %721 = vmatpush1.msra.mxu0 0.0
        %722 = vmatprep.subr.mxu0 0.0
        %723 = vmatpush1.msra.mxu0 0.0
        %724 = vmatprep.subr.mxu0 0.0
        %725 = vmatpush1.msra.mxu0 0.0
        %726 = vmatprep.subr.mxu0 0.0
        %727 = vmatpush1.msra.mxu0 0.0
        %728 = vmatprep.subr.mxu0 0.0
        %729 = vmatpush1.msra.mxu0 0.0
        %730 = vmatprep.subr.mxu0 0.0
        %731 = vmatpush1.msra.mxu0 0.0
        %732 = vmatprep.subr.mxu0 0.0
        %733 = vmatpush1.msra.mxu0 0.0
        %734 = vmatprep.subr.mxu0 0.0
        %735 = vmatpush1.msra.mxu0 0.0
        %736 = vmatprep.subr.mxu0 0.0
        %737 = vmatpush1.msra.mxu0 0.0
        %738 = vmatprep.subr.mxu0 0.0
        %739 = vmatpush1.msra.mxu0 0.0
        %740 = vmatprep.subr.mxu0 0.0
        %741 = vmatpush1.msra.mxu0 0.0
        %742 = vmatprep.subr.mxu0 0.0
        %743 = vmatpush1.msra.mxu0 0.0
        %744 = vmatprep.subr.mxu0 0.0
        %745 = vmatpush1.msra.mxu0 0.0
        %746 = vmatprep.subr.mxu0 0.0
        %747 = vmatpush1.msra.mxu0 0.0
        %748 = vmatprep.subr.mxu0 0.0
        %749 = vmatpush1.msra.mxu0 0.0
        %750 = vmatprep.subr.mxu0 0.0
        %751 = vmatpush1.msra.mxu0 0.0
        %752 = vmatprep.mubr.f32.mxu0 0.0
        %v753 = vand.u32 %v682, 4294901760
        %v754 = vsub.f32 %v682, %v753
        %v755 = vand.u32 %v754, 4294901760
        %v756 = vsub.f32 %v754, %v755
        %v757 = vand.u32 %v756, 4294901760
        %758 = vmatmul.mubr.f32.gmra.mrb[0].mxu0 %v757
        %v759 = vpop.f32.mrb[0].mxu0
        %v760 = vadd.f32 0.0, %v759
        %v761 = vpop.f32.mrb[0].mxu0
        %762 = vdwg.mxu0
        %763 = vmatprep.subr.mxu0 0.0
        %v764 = vand.u32 %v677, 4294901760
        %v765 = vsub.f32 %v677, %v764
        %v766 = vand.u32 %v765, 4294901760
        %v767 = vsub.f32 %v765, %v766
        %v768 = vand.u32 %v767, 4294901760
        %769 = vmatpush1.msra.mxu0 %v768
        %770 = vmatprep.subr.mxu0 0.0
        %v771 = vand.u32 %v678, 4294901760
        %v772 = vsub.f32 %v678, %v771
        %v773 = vand.u32 %v772, 4294901760
        %v774 = vsub.f32 %v772, %v773
        %v775 = vand.u32 %v774, 4294901760
        %776 = vmatpush1.msra.mxu0 %v775
        %777 = vmatprep.subr.mxu0 0.0
        %v778 = vand.u32 %v679, 4294901760
        %v779 = vsub.f32 %v679, %v778
        %v780 = vand.u32 %v779, 4294901760
        %v781 = vsub.f32 %v779, %v780
        %v782 = vand.u32 %v781, 4294901760
        %783 = vmatpush1.msra.mxu0 %v782
        %784 = vmatprep.subr.mxu0 0.0
        %v785 = vand.u32 %v680, 4294901760
        %v786 = vsub.f32 %v680, %v785
        %v787 = vand.u32 %v786, 4294901760
        %v788 = vsub.f32 %v786, %v787
        %v789 = vand.u32 %v788, 4294901760
        %790 = vmatpush1.msra.mxu0 %v789
        %791 = vmatprep.subr.mxu0 0.0
        %792 = vmatpush1.msra.mxu0 0.0
        %793 = vmatprep.subr.mxu0 0.0
        %794 = vmatpush1.msra.mxu0 0.0
        %795 = vmatprep.subr.mxu0 0.0
        %796 = vmatpush1.msra.mxu0 0.0
        %797 = vmatprep.subr.mxu0 0.0
        %798 = vmatpush1.msra.mxu0 0.0
        %799 = vmatprep.subr.mxu0 0.0
        %800 = vmatpush1.msra.mxu0 0.0
        %801 = vmatprep.subr.mxu0 0.0
        %802 = vmatpush1.msra.mxu0 0.0
        %803 = vmatprep.subr.mxu0 0.0
        %804 = vmatpush1.msra.mxu0 0.0
        %805 = vmatprep.subr.mxu0 0.0
        %806 = vmatpush1.msra.mxu0 0.0
        %807 = vmatprep.subr.mxu0 0.0
        %808 = vmatpush1.msra.mxu0 0.0
        %809 = vmatprep.subr.mxu0 0.0
        %810 = vmatpush1.msra.mxu0 0.0
        %811 = vmatprep.subr.mxu0 0.0
        %812 = vmatpush1.msra.mxu0 0.0
        %813 = vmatprep.subr.mxu0 0.0
        %814 = vmatpush1.msra.mxu0 0.0
        %815 = vmatprep.subr.mxu0 0.0
        %816 = vmatpush1.msra.mxu0 0.0
        %817 = vmatprep.subr.mxu0 0.0
        %818 = vmatpush1.msra.mxu0 0.0
        %819 = vmatprep.subr.mxu0 0.0
        %820 = vmatpush1.msra.mxu0 0.0
        %821 = vmatprep.subr.mxu0 0.0
        %822 = vmatpush1.msra.mxu0 0.0
        %823 = vmatprep.subr.mxu0 0.0
        %824 = vmatpush1.msra.mxu0 0.0
        %825 = vmatprep.subr.mxu0 0.0
        %826 = vmatpush1.msra.mxu0 0.0
        %827 = vmatprep.subr.mxu0 0.0
        %828 = vmatpush1.msra.mxu0 0.0
        %829 = vmatprep.subr.mxu0 0.0
        %830 = vmatpush1.msra.mxu0 0.0
        %831 = vmatprep.subr.mxu0 0.0
        %832 = vmatpush1.msra.mxu0 0.0
        %833 = vmatprep.subr.mxu0 0.0
        %834 = vmatpush1.msra.mxu0 0.0
        %835 = vmatprep.subr.mxu0 0.0
        %836 = vmatpush1.msra.mxu0 0.0
        %837 = vmatprep.subr.mxu0 0.0
        %838 = vmatpush1.msra.mxu0 0.0
        %839 = vmatprep.subr.mxu0 0.0
        %840 = vmatpush1.msra.mxu0 0.0
        %841 = vmatprep.subr.mxu0 0.0
        %842 = vmatpush1.msra.mxu0 0.0
        %843 = vmatprep.subr.mxu0 0.0
        %844 = vmatpush1.msra.mxu0 0.0
        %845 = vmatprep.subr.mxu0 0.0
        %846 = vmatpush1.msra.mxu0 0.0
        %847 = vmatprep.mubr.f32.mxu0 0.0
        %v848 = vand.u32 %v682, 4294901760
        %849 = vmatmul.mubr.f32.gmra.mrb[0].mxu0 %v848
        %v850 = vpop.f32.mrb[0].mxu0
        %v851 = vadd.f32 %v760, %v850
        %v852 = vpop.f32.mrb[0].mxu0
        %853 = vdwg.mxu0
        %854 = vmatprep.subr.mxu0 0.0
        %v855 = vand.u32 %v677, 4294901760
        %v856 = vsub.f32 %v677, %v855
        %857 = vmatpush1.msra.mxu0 %v856
        %858 = vmatprep.subr.mxu0 0.0
        %v859 = vand.u32 %v678, 4294901760
        %v860 = vsub.f32 %v678, %v859
        %861 = vmatpush1.msra.mxu0 %v860
        %862 = vmatprep.subr.mxu0 0.0
        %v863 = vand.u32 %v679, 4294901760
        %v864 = vsub.f32 %v679, %v863
        %865 = vmatpush1.msra.mxu0 %v864
        %866 = vmatprep.subr.mxu0 0.0
        %v867 = vand.u32 %v680, 4294901760
        %v868 = vsub.f32 %v680, %v867
        %869 = vmatpush1.msra.mxu0 %v868
        %870 = vmatprep.subr.mxu0 0.0
        %871 = vmatpush1.msra.mxu0 0.0
        %872 = vmatprep.subr.mxu0 0.0
        %873 = vmatpush1.msra.mxu0 0.0
        %874 = vmatprep.subr.mxu0 0.0
        %875 = vmatpush1.msra.mxu0 0.0
        %876 = vmatprep.subr.mxu0 0.0
        %877 = vmatpush1.msra.mxu0 0.0
        %878 = vmatprep.subr.mxu0 0.0
        %879 = vmatpush1.msra.mxu0 0.0
        %880 = vmatprep.subr.mxu0 0.0
        %881 = vmatpush1.msra.mxu0 0.0
        %882 = vmatprep.subr.mxu0 0.0
        %883 = vmatpush1.msra.mxu0 0.0
        %884 = vmatprep.subr.mxu0 0.0
        %885 = vmatpush1.msra.mxu0 0.0
        %886 = vmatprep.subr.mxu0 0.0
        %887 = vmatpush1.msra.mxu0 0.0
        %888 = vmatprep.subr.mxu0 0.0
        %889 = vmatpush1.msra.mxu0 0.0
        %890 = vmatprep.subr.mxu0 0.0
        %891 = vmatpush1.msra.mxu0 0.0
        %892 = vmatprep.subr.mxu0 0.0
        %893 = vmatpush1.msra.mxu0 0.0
        %894 = vmatprep.subr.mxu0 0.0
        %895 = vmatpush1.msra.mxu0 0.0
        %896 = vmatprep.subr.mxu0 0.0
        %897 = vmatpush1.msra.mxu0 0.0
        %898 = vmatprep.subr.mxu0 0.0
        %899 = vmatpush1.msra.mxu0 0.0
        %900 = vmatprep.subr.mxu0 0.0
        %901 = vmatpush1.msra.mxu0 0.0
        %902 = vmatprep.subr.mxu0 0.0
        %903 = vmatpush1.msra.mxu0 0.0
        %904 = vmatprep.subr.mxu0 0.0
        %905 = vmatpush1.msra.mxu0 0.0
        %906 = vmatprep.subr.mxu0 0.0
        %907 = vmatpush1.msra.mxu0 0.0
        %908 = vmatprep.subr.mxu0 0.0
        %909 = vmatpush1.msra.mxu0 0.0
        %910 = vmatprep.subr.mxu0 0.0
        %911 = vmatpush1.msra.mxu0 0.0
        %912 = vmatprep.subr.mxu0 0.0
        %913 = vmatpush1.msra.mxu0 0.0
        %914 = vmatprep.subr.mxu0 0.0
        %915 = vmatpush1.msra.mxu0 0.0
        %916 = vmatprep.subr.mxu0 0.0
        %917 = vmatpush1.msra.mxu0 0.0
        %918 = vmatprep.subr.mxu0 0.0
        %919 = vmatpush1.msra.mxu0 0.0
        %920 = vmatprep.subr.mxu0 0.0
        %921 = vmatpush1.msra.mxu0 0.0
        %922 = vmatprep.subr.mxu0 0.0
        %923 = vmatpush1.msra.mxu0 0.0
        %924 = vmatprep.subr.mxu0 0.0
        %925 = vmatpush1.msra.mxu0 0.0
        %926 = vmatprep.mubr.f32.mxu0 0.0
        %v927 = vand.u32 %v682, 4294901760
        %v928 = vsub.f32 %v682, %v927
        %929 = vmatmul.mubr.f32.gmra.mrb[0].mxu0 %v928
        %v930 = vpop.f32.mrb[0].mxu0
        %v931 = vadd.f32 %v851, %v930
        %v932 = vpop.f32.mrb[0].mxu0
        %933 = vdwg.mxu0
        %934 = vmatprep.subr.mxu0 0.0
        %v935 = vand.u32 %v677, 4294901760
        %936 = vmatpush1.msra.mxu0 %v935
        %937 = vmatprep.subr.mxu0 0.0
        %v938 = vand.u32 %v678, 4294901760
        %939 = vmatpush1.msra.mxu0 %v938
        %940 = vmatprep.subr.mxu0 0.0
        %v941 = vand.u32 %v679, 4294901760
        %942 = vmatpush1.msra.mxu0 %v941
        %943 = vmatprep.subr.mxu0 0.0
        %v944 = vand.u32 %v680, 4294901760
        %945 = vmatpush1.msra.mxu0 %v944
        %946 = vmatprep.subr.mxu0 0.0
        %947 = vmatpush1.msra.mxu0 0.0
        %948 = vmatprep.subr.mxu0 0.0
        %949 = vmatpush1.msra.mxu0 0.0
        %950 = vmatprep.subr.mxu0 0.0
        %951 = vmatpush1.msra.mxu0 0.0
        %952 = vmatprep.subr.mxu0 0.0
        %953 = vmatpush1.msra.mxu0 0.0
        %954 = vmatprep.subr.mxu0 0.0
        %955 = vmatpush1.msra.mxu0 0.0
        %956 = vmatprep.subr.mxu0 0.0
        %957 = vmatpush1.msra.mxu0 0.0
        %958 = vmatprep.subr.mxu0 0.0
        %959 = vmatpush1.msra.mxu0 0.0
        %960 = vmatprep.subr.mxu0 0.0
        %961 = vmatpush1.msra.mxu0 0.0
        %962 = vmatprep.subr.mxu0 0.0
        %963 = vmatpush1.msra.mxu0 0.0
        %964 = vmatprep.subr.mxu0 0.0
        %965 = vmatpush1.msra.mxu0 0.0
        %966 = vmatprep.subr.mxu0 0.0
        %967 = vmatpush1.msra.mxu0 0.0
        %968 = vmatprep.subr.mxu0 0.0
        %969 = vmatpush1.msra.mxu0 0.0
        %970 = vmatprep.subr.mxu0 0.0
        %971 = vmatpush1.msra.mxu0 0.0
        %972 = vmatprep.subr.mxu0 0.0
        %973 = vmatpush1.msra.mxu0 0.0
        %974 = vmatprep.subr.mxu0 0.0
        %975 = vmatpush1.msra.mxu0 0.0
        %976 = vmatprep.subr.mxu0 0.0
        %977 = vmatpush1.msra.mxu0 0.0
        %978 = vmatprep.subr.mxu0 0.0
        %979 = vmatpush1.msra.mxu0 0.0
        %980 = vmatprep.subr.mxu0 0.0
        %981 = vmatpush1.msra.mxu0 0.0
        %982 = vmatprep.subr.mxu0 0.0
        %983 = vmatpush1.msra.mxu0 0.0
        %984 = vmatprep.subr.mxu0 0.0
        %985 = vmatpush1.msra.mxu0 0.0
        %986 = vmatprep.subr.mxu0 0.0
        %987 = vmatpush1.msra.mxu0 0.0
        %988 = vmatprep.subr.mxu0 0.0
        %989 = vmatpush1.msra.mxu0 0.0
        %990 = vmatprep.subr.mxu0 0.0
        %991 = vmatpush1.msra.mxu0 0.0
        %992 = vmatprep.subr.mxu0 0.0
        %993 = vmatpush1.msra.mxu0 0.0
        %994 = vmatprep.subr.mxu0 0.0
        %995 = vmatpush1.msra.mxu0 0.0
        %996 = vmatprep.subr.mxu0 0.0
        %997 = vmatpush1.msra.mxu0 0.0
        %998 = vmatprep.subr.mxu0 0.0
        %999 = vmatpush1.msra.mxu0 0.0
        %1000 = vmatprep.subr.mxu0 0.0
        %1001 = vmatpush1.msra.mxu0 0.0
        %1002 = vmatprep.mubr.f32.mxu0 0.0
        %v1003 = vand.u32 %v682, 4294901760
        %v1004 = vsub.f32 %v682, %v1003
        %v1005 = vand.u32 %v1004, 4294901760
        %1006 = vmatmul.mubr.f32.gmra.mrb[0].mxu0 %v1005
        %v1007 = vpop.f32.mrb[0].mxu0
        %v1008 = vadd.f32 %v931, %v1007
        %v1009 = vpop.f32.mrb[0].mxu0
        %1010 = vdwg.mxu0
        %1011 = vmatprep.subr.mxu0 0.0
        %v1012 = vand.u32 %v677, 4294901760
        %v1013 = vsub.f32 %v677, %v1012
        %v1014 = vand.u32 %v1013, 4294901760
        %1015 = vmatpush1.msra.mxu0 %v1014
        %1016 = vmatprep.subr.mxu0 0.0
        %v1017 = vand.u32 %v678, 4294901760
        %v1018 = vsub.f32 %v678, %v1017
        %v1019 = vand.u32 %v1018, 4294901760
        %1020 = vmatpush1.msra.mxu0 %v1019
        %1021 = vmatprep.subr.mxu0 0.0
        %v1022 = vand.u32 %v679, 4294901760
        %v1023 = vsub.f32 %v679, %v1022
        %v1024 = vand.u32 %v1023, 4294901760
        %1025 = vmatpush1.msra.mxu0 %v1024
        %1026 = vmatprep.subr.mxu0 0.0
        %v1027 = vand.u32 %v680, 4294901760
        %v1028 = vsub.f32 %v680, %v1027
        %v1029 = vand.u32 %v1028, 4294901760
        %1030 = vmatpush1.msra.mxu0 %v1029
        %1031 = vmatprep.subr.mxu0 0.0
        %1032 = vmatpush1.msra.mxu0 0.0
        %1033 = vmatprep.subr.mxu0 0.0
        %1034 = vmatpush1.msra.mxu0 0.0
        %1035 = vmatprep.subr.mxu0 0.0
        %1036 = vmatpush1.msra.mxu0 0.0
        %1037 = vmatprep.subr.mxu0 0.0
        %1038 = vmatpush1.msra.mxu0 0.0
        %1039 = vmatprep.subr.mxu0 0.0
        %1040 = vmatpush1.msra.mxu0 0.0
        %1041 = vmatprep.subr.mxu0 0.0
        %1042 = vmatpush1.msra.mxu0 0.0
        %1043 = vmatprep.subr.mxu0 0.0
        %1044 = vmatpush1.msra.mxu0 0.0
        %1045 = vmatprep.subr.mxu0 0.0
        %1046 = vmatpush1.msra.mxu0 0.0
        %1047 = vmatprep.subr.mxu0 0.0
        %1048 = vmatpush1.msra.mxu0 0.0
        %1049 = vmatprep.subr.mxu0 0.0
        %1050 = vmatpush1.msra.mxu0 0.0
        %1051 = vmatprep.subr.mxu0 0.0
        %1052 = vmatpush1.msra.mxu0 0.0
        %1053 = vmatprep.subr.mxu0 0.0
        %1054 = vmatpush1.msra.mxu0 0.0
        %1055 = vmatprep.subr.mxu0 0.0
        %1056 = vmatpush1.msra.mxu0 0.0
        %1057 = vmatprep.subr.mxu0 0.0
        %1058 = vmatpush1.msra.mxu0 0.0
        %1059 = vmatprep.subr.mxu0 0.0
        %1060 = vmatpush1.msra.mxu0 0.0
        %1061 = vmatprep.subr.mxu0 0.0
        %1062 = vmatpush1.msra.mxu0 0.0
        %1063 = vmatprep.subr.mxu0 0.0
        %1064 = vmatpush1.msra.mxu0 0.0
        %1065 = vmatprep.subr.mxu0 0.0
        %1066 = vmatpush1.msra.mxu0 0.0
        %1067 = vmatprep.subr.mxu0 0.0
        %1068 = vmatpush1.msra.mxu0 0.0
        %1069 = vmatprep.subr.mxu0 0.0
        %1070 = vmatpush1.msra.mxu0 0.0
        %1071 = vmatprep.subr.mxu0 0.0
        %1072 = vmatpush1.msra.mxu0 0.0
        %1073 = vmatprep.subr.mxu0 0.0
        %1074 = vmatpush1.msra.mxu0 0.0
        %1075 = vmatprep.subr.mxu0 0.0
        %1076 = vmatpush1.msra.mxu0 0.0
        %1077 = vmatprep.subr.mxu0 0.0
        %1078 = vmatpush1.msra.mxu0 0.0
        %1079 = vmatprep.subr.mxu0 0.0
        %1080 = vmatpush1.msra.mxu0 0.0
        %1081 = vmatprep.subr.mxu0 0.0
        %1082 = vmatpush1.msra.mxu0 0.0
        %1083 = vmatprep.subr.mxu0 0.0
        %1084 = vmatpush1.msra.mxu0 0.0
        %1085 = vmatprep.subr.mxu0 0.0
        %1086 = vmatpush1.msra.mxu0 0.0
        %1087 = vmatprep.mubr.f32.mxu0 0.0
        %v1088 = vand.u32 %v682, 4294901760
        %1089 = vmatmul.mubr.f32.gmra.mrb[0].mxu0 %v1088
        %v1090 = vpop.f32.mrb[0].mxu0
        %v1091 = vadd.f32 %v1008, %v1090
        %v1092 = vpop.f32.mrb[0].mxu0
        %1093 = vdwg.mxu0
        %1094 = vmatprep.subr.mxu0 0.0
        %v1095 = vand.u32 %v677, 4294901760
        %1096 = vmatpush1.msra.mxu0 %v1095
        %1097 = vmatprep.subr.mxu0 0.0
        %v1098 = vand.u32 %v678, 4294901760
        %1099 = vmatpush1.msra.mxu0 %v1098
        %1100 = vmatprep.subr.mxu0 0.0
        %v1101 = vand.u32 %v679, 4294901760
        %1102 = vmatpush1.msra.mxu0 %v1101
        %1103 = vmatprep.subr.mxu0 0.0
        %v1104 = vand.u32 %v680, 4294901760
        %1105 = vmatpush1.msra.mxu0 %v1104
        %1106 = vmatprep.subr.mxu0 0.0
        %1107 = vmatpush1.msra.mxu0 0.0
        %1108 = vmatprep.subr.mxu0 0.0
        %1109 = vmatpush1.msra.mxu0 0.0
        %1110 = vmatprep.subr.mxu0 0.0
        %1111 = vmatpush1.msra.mxu0 0.0
        %1112 = vmatprep.subr.mxu0 0.0
        %1113 = vmatpush1.msra.mxu0 0.0
        %1114 = vmatprep.subr.mxu0 0.0
        %1115 = vmatpush1.msra.mxu0 0.0
        %1116 = vmatprep.subr.mxu0 0.0
        %1117 = vmatpush1.msra.mxu0 0.0
        %1118 = vmatprep.subr.mxu0 0.0
        %1119 = vmatpush1.msra.mxu0 0.0
        %1120 = vmatprep.subr.mxu0 0.0
        %1121 = vmatpush1.msra.mxu0 0.0
        %1122 = vmatprep.subr.mxu0 0.0
        %1123 = vmatpush1.msra.mxu0 0.0
        %1124 = vmatprep.subr.mxu0 0.0
        %1125 = vmatpush1.msra.mxu0 0.0
        %1126 = vmatprep.subr.mxu0 0.0
        %1127 = vmatpush1.msra.mxu0 0.0
        %1128 = vmatprep.subr.mxu0 0.0
        %1129 = vmatpush1.msra.mxu0 0.0
        %1130 = vmatprep.subr.mxu0 0.0
        %1131 = vmatpush1.msra.mxu0 0.0
        %1132 = vmatprep.subr.mxu0 0.0
        %1133 = vmatpush1.msra.mxu0 0.0
        %1134 = vmatprep.subr.mxu0 0.0
        %1135 = vmatpush1.msra.mxu0 0.0
        %1136 = vmatprep.subr.mxu0 0.0
        %1137 = vmatpush1.msra.mxu0 0.0
        %1138 = vmatprep.subr.mxu0 0.0
        %1139 = vmatpush1.msra.mxu0 0.0
        %1140 = vmatprep.subr.mxu0 0.0
        %1141 = vmatpush1.msra.mxu0 0.0
        %1142 = vmatprep.subr.mxu0 0.0
        %1143 = vmatpush1.msra.mxu0 0.0
        %1144 = vmatprep.subr.mxu0 0.0
        %1145 = vmatpush1.msra.mxu0 0.0
        %1146 = vmatprep.subr.mxu0 0.0
        %1147 = vmatpush1.msra.mxu0 0.0
        %1148 = vmatprep.subr.mxu0 0.0
        %1149 = vmatpush1.msra.mxu0 0.0
        %1150 = vmatprep.subr.mxu0 0.0
        %1151 = vmatpush1.msra.mxu0 0.0
        %1152 = vmatprep.subr.mxu0 0.0
        %1153 = vmatpush1.msra.mxu0 0.0
        %1154 = vmatprep.subr.mxu0 0.0
        %1155 = vmatpush1.msra.mxu0 0.0
        %1156 = vmatprep.subr.mxu0 0.0
        %1157 = vmatpush1.msra.mxu0 0.0
        %1158 = vmatprep.subr.mxu0 0.0
        %1159 = vmatpush1.msra.mxu0 0.0
        %1160 = vmatprep.subr.mxu0 0.0
        %1161 = vmatpush1.msra.mxu0 0.0
        %1162 = vmatprep.mubr.f32.mxu0 0.0
        %v1163 = vand.u32 %v682, 4294901760
        %1164 = vmatmul.mubr.f32.gmra.mrb[0].mxu0 %v1163
        %v1165 = vpop.f32.mrb[0].mxu0
        %v1166 = vadd.f32 %v1091, %v1165
        %v1167 = vpop.f32.mrb[0].mxu0
        %1168 = vdwg.mxu0
        %vm1169 = vcmask 130048
        %v1171 = vsel %vm1169, %v1166, 0
        %v1174 = vsel %vm1169, %v674, 0
        %1176 = vmatprep.subr.mxu0 0.0
        %v1177 = vand.u32 %v1174, 4294901760
        %1178 = vmatpush1.xpose.msra.mxu0 %v1177
        %1179 = vmatprep.subr.mxu0 0.0
        %1180 = vmatpush1.xpose.msra.mxu0 0.0
        %1181 = vmatprep.subr.mxu0 0.0
        %1182 = vmatpush1.xpose.msra.mxu0 0.0
        %1183 = vmatprep.subr.mxu0 0.0
        %1184 = vmatpush1.xpose.msra.mxu0 0.0
        %1185 = vmatprep.subr.mxu0 0.0
        %1186 = vmatpush1.xpose.msra.mxu0 0.0
        %1187 = vmatprep.subr.mxu0 0.0
        %1188 = vmatpush1.xpose.msra.mxu0 0.0
        %1189 = vmatprep.subr.mxu0 0.0
        %1190 = vmatpush1.xpose.msra.mxu0 0.0
        %1191 = vmatprep.subr.mxu0 0.0
        %1192 = vmatpush1.xpose.msra.mxu0 0.0
        %1193 = vmatprep.subr.mxu0 0.0
        %1194 = vmatpush1.xpose.msra.mxu0 0.0
        %1195 = vmatprep.subr.mxu0 0.0
        %1196 = vmatpush1.xpose.msra.mxu0 0.0
        %1197 = vmatprep.subr.mxu0 0.0
        %1198 = vmatpush1.xpose.msra.mxu0 0.0
        %1199 = vmatprep.subr.mxu0 0.0
        %1200 = vmatpush1.xpose.msra.mxu0 0.0
        %1201 = vmatprep.subr.mxu0 0.0
        %1202 = vmatpush1.xpose.msra.mxu0 0.0
        %1203 = vmatprep.subr.mxu0 0.0
        %1204 = vmatpush1.xpose.msra.mxu0 0.0
        %1205 = vmatprep.subr.mxu0 0.0
        %1206 = vmatpush1.xpose.msra.mxu0 0.0
        %1207 = vmatprep.subr.mxu0 0.0
        %1208 = vmatpush1.xpose.msra.mxu0 0.0
        %1209 = vmatprep.subr.mxu0 0.0
        %1210 = vmatpush1.xpose.msra.mxu0 0.0
        %1211 = vmatprep.subr.mxu0 0.0
        %1212 = vmatpush1.xpose.msra.mxu0 0.0
        %1213 = vmatprep.subr.mxu0 0.0
        %1214 = vmatpush1.xpose.msra.mxu0 0.0
        %1215 = vmatprep.subr.mxu0 0.0
        %1216 = vmatpush1.xpose.msra.mxu0 0.0
        %1217 = vmatprep.subr.mxu0 0.0
        %1218 = vmatpush1.xpose.msra.mxu0 0.0
        %1219 = vmatprep.subr.mxu0 0.0
        %1220 = vmatpush1.xpose.msra.mxu0 0.0
        %1221 = vmatprep.subr.mxu0 0.0
        %1222 = vmatpush1.xpose.msra.mxu0 0.0
        %1223 = vmatprep.subr.mxu0 0.0
        %1224 = vmatpush1.xpose.msra.mxu0 0.0
        %1225 = vmatprep.subr.mxu0 0.0
        %1226 = vmatpush1.xpose.msra.mxu0 0.0
        %1227 = vmatprep.subr.mxu0 0.0
        %1228 = vmatpush1.xpose.msra.mxu0 0.0
        %1229 = vmatprep.subr.mxu0 0.0
        %1230 = vmatpush1.xpose.msra.mxu0 0.0
        %1231 = vmatprep.subr.mxu0 0.0
        %1232 = vmatpush1.xpose.msra.mxu0 0.0
        %1233 = vmatprep.subr.mxu0 0.0
        %1234 = vmatpush1.xpose.msra.mxu0 0.0
        %1235 = vmatprep.subr.mxu0 0.0
        %1236 = vmatpush1.xpose.msra.mxu0 0.0
        %1237 = vmatprep.subr.mxu0 0.0
        %1238 = vmatpush1.xpose.msra.mxu0 0.0
        %1239 = vmatprep.subr.mxu0 0.0
        %1240 = vmatpush1.xpose.msra.mxu0 0.0
        %1241 = vmatprep.mubr.f32.mxu0 0.0
        %v1242 = vand.u32 %v1171, 4294901760
        %v1243 = vsub.f32 %v1171, %v1242
        %v1244 = vand.u32 %v1243, 4294901760
        %v1245 = vsub.f32 %v1243, %v1244
        %v1246 = vand.u32 %v1245, 4294901760
        %1247 = vmatmul.mubr.f32.gmra.mrb[0].mxu0 %v1246
        %v1248 = vpop.f32.mrb[0].mxu0
        %v1249 = vadd.f32 0.0, %v1248
        %v1250 = vpop.f32.mrb[0].mxu0
        %1251 = vdwg.mxu0
        %1252 = vmatprep.subr.mxu0 0.0
        %v1253 = vand.u32 %v1174, 4294901760
        %v1254 = vsub.f32 %v1174, %v1253
        %v1255 = vand.u32 %v1254, 4294901760
        %v1256 = vsub.f32 %v1254, %v1255
        %v1257 = vand.u32 %v1256, 4294901760
        %1258 = vmatpush1.xpose.msra.mxu0 %v1257
        %1259 = vmatprep.subr.mxu0 0.0
        %1260 = vmatpush1.xpose.msra.mxu0 0.0
        %1261 = vmatprep.subr.mxu0 0.0
        %1262 = vmatpush1.xpose.msra.mxu0 0.0
        %1263 = vmatprep.subr.mxu0 0.0
        %1264 = vmatpush1.xpose.msra.mxu0 0.0
        %1265 = vmatprep.subr.mxu0 0.0
        %1266 = vmatpush1.xpose.msra.mxu0 0.0
        %1267 = vmatprep.subr.mxu0 0.0
        %1268 = vmatpush1.xpose.msra.mxu0 0.0
        %1269 = vmatprep.subr.mxu0 0.0
        %1270 = vmatpush1.xpose.msra.mxu0 0.0
        %1271 = vmatprep.subr.mxu0 0.0
        %1272 = vmatpush1.xpose.msra.mxu0 0.0
        %1273 = vmatprep.subr.mxu0 0.0
        %1274 = vmatpush1.xpose.msra.mxu0 0.0
        %1275 = vmatprep.subr.mxu0 0.0
        %1276 = vmatpush1.xpose.msra.mxu0 0.0
        %1277 = vmatprep.subr.mxu0 0.0
        %1278 = vmatpush1.xpose.msra.mxu0 0.0
        %1279 = vmatprep.subr.mxu0 0.0
        %1280 = vmatpush1.xpose.msra.mxu0 0.0
        %1281 = vmatprep.subr.mxu0 0.0
        %1282 = vmatpush1.xpose.msra.mxu0 0.0
        %1283 = vmatprep.subr.mxu0 0.0
        %1284 = vmatpush1.xpose.msra.mxu0 0.0
        %1285 = vmatprep.subr.mxu0 0.0
        %1286 = vmatpush1.xpose.msra.mxu0 0.0
        %1287 = vmatprep.subr.mxu0 0.0
        %1288 = vmatpush1.xpose.msra.mxu0 0.0
        %1289 = vmatprep.subr.mxu0 0.0
        %1290 = vmatpush1.xpose.msra.mxu0 0.0
        %1291 = vmatprep.subr.mxu0 0.0
        %1292 = vmatpush1.xpose.msra.mxu0 0.0
        %1293 = vmatprep.subr.mxu0 0.0
        %1294 = vmatpush1.xpose.msra.mxu0 0.0
        %1295 = vmatprep.subr.mxu0 0.0
        %1296 = vmatpush1.xpose.msra.mxu0 0.0
        %1297 = vmatprep.subr.mxu0 0.0
        %1298 = vmatpush1.xpose.msra.mxu0 0.0
        %1299 = vmatprep.subr.mxu0 0.0
        %1300 = vmatpush1.xpose.msra.mxu0 0.0
        %1301 = vmatprep.subr.mxu0 0.0
        %1302 = vmatpush1.xpose.msra.mxu0 0.0
        %1303 = vmatprep.subr.mxu0 0.0
        %1304 = vmatpush1.xpose.msra.mxu0 0.0
        %1305 = vmatprep.subr.mxu0 0.0
        %1306 = vmatpush1.xpose.msra.mxu0 0.0
        %1307 = vmatprep.subr.mxu0 0.0
        %1308 = vmatpush1.xpose.msra.mxu0 0.0
        %1309 = vmatprep.subr.mxu0 0.0
        %1310 = vmatpush1.xpose.msra.mxu0 0.0
        %1311 = vmatprep.subr.mxu0 0.0
        %1312 = vmatpush1.xpose.msra.mxu0 0.0
        %1313 = vmatprep.subr.mxu0 0.0
        %1314 = vmatpush1.xpose.msra.mxu0 0.0
        %1315 = vmatprep.subr.mxu0 0.0
        %1316 = vmatpush1.xpose.msra.mxu0 0.0
        %1317 = vmatprep.subr.mxu0 0.0
        %1318 = vmatpush1.xpose.msra.mxu0 0.0
        %1319 = vmatprep.subr.mxu0 0.0
        %1320 = vmatpush1.xpose.msra.mxu0 0.0
        %1321 = vmatprep.mubr.f32.mxu0 0.0
        %v1322 = vand.u32 %v1171, 4294901760
        %1323 = vmatmul.mubr.f32.gmra.mrb[0].mxu0 %v1322
        %v1324 = vpop.f32.mrb[0].mxu0
        %v1325 = vadd.f32 %v1249, %v1324
        %v1326 = vpop.f32.mrb[0].mxu0
        %1327 = vdwg.mxu0
        %1328 = vmatprep.subr.mxu0 0.0
        %v1329 = vand.u32 %v1174, 4294901760
        %v1330 = vsub.f32 %v1174, %v1329
        %1331 = vmatpush1.xpose.msra.mxu0 %v1330
        %1332 = vmatprep.subr.mxu0 0.0
        %1333 = vmatpush1.xpose.msra.mxu0 0.0
        %1334 = vmatprep.subr.mxu0 0.0
        %1335 = vmatpush1.xpose.msra.mxu0 0.0
        %1336 = vmatprep.subr.mxu0 0.0
        %1337 = vmatpush1.xpose.msra.mxu0 0.0
        %1338 = vmatprep.subr.mxu0 0.0
        %1339 = vmatpush1.xpose.msra.mxu0 0.0
        %1340 = vmatprep.subr.mxu0 0.0
        %1341 = vmatpush1.xpose.msra.mxu0 0.0
        %1342 = vmatprep.subr.mxu0 0.0
        %1343 = vmatpush1.xpose.msra.mxu0 0.0
        %1344 = vmatprep.subr.mxu0 0.0
        %1345 = vmatpush1.xpose.msra.mxu0 0.0
        %1346 = vmatprep.subr.mxu0 0.0
        %1347 = vmatpush1.xpose.msra.mxu0 0.0
        %1348 = vmatprep.subr.mxu0 0.0
        %1349 = vmatpush1.xpose.msra.mxu0 0.0
        %1350 = vmatprep.subr.mxu0 0.0
        %1351 = vmatpush1.xpose.msra.mxu0 0.0
        %1352 = vmatprep.subr.mxu0 0.0
        %1353 = vmatpush1.xpose.msra.mxu0 0.0
        %1354 = vmatprep.subr.mxu0 0.0
        %1355 = vmatpush1.xpose.msra.mxu0 0.0
        %1356 = vmatprep.subr.mxu0 0.0
        %1357 = vmatpush1.xpose.msra.mxu0 0.0
        %1358 = vmatprep.subr.mxu0 0.0
        %1359 = vmatpush1.xpose.msra.mxu0 0.0
        %1360 = vmatprep.subr.mxu0 0.0
        %1361 = vmatpush1.xpose.msra.mxu0 0.0
        %1362 = vmatprep.subr.mxu0 0.0
        %1363 = vmatpush1.xpose.msra.mxu0 0.0
        %1364 = vmatprep.subr.mxu0 0.0
        %1365 = vmatpush1.xpose.msra.mxu0 0.0
        %1366 = vmatprep.subr.mxu0 0.0
        %1367 = vmatpush1.xpose.msra.mxu0 0.0
        %1368 = vmatprep.subr.mxu0 0.0
        %1369 = vmatpush1.xpose.msra.mxu0 0.0
        %1370 = vmatprep.subr.mxu0 0.0
        %1371 = vmatpush1.xpose.msra.mxu0 0.0
        %1372 = vmatprep.subr.mxu0 0.0
        %1373 = vmatpush1.xpose.msra.mxu0 0.0
        %1374 = vmatprep.subr.mxu0 0.0
        %1375 = vmatpush1.xpose.msra.mxu0 0.0
        %1376 = vmatprep.subr.mxu0 0.0
        %1377 = vmatpush1.xpose.msra.mxu0 0.0
        %1378 = vmatprep.subr.mxu0 0.0
        %1379 = vmatpush1.xpose.msra.mxu0 0.0
        %1380 = vmatprep.subr.mxu0 0.0
        %1381 = vmatpush1.xpose.msra.mxu0 0.0
        %1382 = vmatprep.subr.mxu0 0.0
        %1383 = vmatpush1.xpose.msra.mxu0 0.0
        %1384 = vmatprep.subr.mxu0 0.0
        %1385 = vmatpush1.xpose.msra.mxu0 0.0
        %1386 = vmatprep.subr.mxu0 0.0
        %1387 = vmatpush1.xpose.msra.mxu0 0.0
        %1388 = vmatprep.subr.mxu0 0.0
        %1389 = vmatpush1.xpose.msra.mxu0 0.0
        %1390 = vmatprep.subr.mxu0 0.0
        %1391 = vmatpush1.xpose.msra.mxu0 0.0
        %1392 = vmatprep.subr.mxu0 0.0
        %1393 = vmatpush1.xpose.msra.mxu0 0.0
        %1394 = vmatprep.mubr.f32.mxu0 0.0
        %v1395 = vand.u32 %v1171, 4294901760
        %v1396 = vsub.f32 %v1171, %v1395
        %1397 = vmatmul.mubr.f32.gmra.mrb[0].mxu0 %v1396
        %v1398 = vpop.f32.mrb[0].mxu0
        %v1399 = vadd.f32 %v1325, %v1398
        %v1400 = vpop.f32.mrb[0].mxu0
        %1401 = vdwg.mxu0
        %1402 = vmatprep.subr.mxu0 0.0
        %v1403 = vand.u32 %v1174, 4294901760
        %1404 = vmatpush1.xpose.msra.mxu0 %v1403
        %1405 = vmatprep.subr.mxu0 0.0
        %1406 = vmatpush1.xpose.msra.mxu0 0.0
        %1407 = vmatprep.subr.mxu0 0.0
        %1408 = vmatpush1.xpose.msra.mxu0 0.0
        %1409 = vmatprep.subr.mxu0 0.0
        %1410 = vmatpush1.xpose.msra.mxu0 0.0
        %1411 = vmatprep.subr.mxu0 0.0
        %1412 = vmatpush1.xpose.msra.mxu0 0.0
        %1413 = vmatprep.subr.mxu0 0.0
        %1414 = vmatpush1.xpose.msra.mxu0 0.0
        %1415 = vmatprep.subr.mxu0 0.0
        %1416 = vmatpush1.xpose.msra.mxu0 0.0
        %1417 = vmatprep.subr.mxu0 0.0
        %1418 = vmatpush1.xpose.msra.mxu0 0.0
        %1419 = vmatprep.subr.mxu0 0.0
        %1420 = vmatpush1.xpose.msra.mxu0 0.0
        %1421 = vmatprep.subr.mxu0 0.0
        %1422 = vmatpush1.xpose.msra.mxu0 0.0
        %1423 = vmatprep.subr.mxu0 0.0
        %1424 = vmatpush1.xpose.msra.mxu0 0.0
        %1425 = vmatprep.subr.mxu0 0.0
        %1426 = vmatpush1.xpose.msra.mxu0 0.0
        %1427 = vmatprep.subr.mxu0 0.0
        %1428 = vmatpush1.xpose.msra.mxu0 0.0
        %1429 = vmatprep.subr.mxu0 0.0
        %1430 = vmatpush1.xpose.msra.mxu0 0.0
        %1431 = vmatprep.subr.mxu0 0.0
        %1432 = vmatpush1.xpose.msra.mxu0 0.0
        %1433 = vmatprep.subr.mxu0 0.0
        %1434 = vmatpush1.xpose.msra.mxu0 0.0
        %1435 = vmatprep.subr.mxu0 0.0
        %1436 = vmatpush1.xpose.msra.mxu0 0.0
        %1437 = vmatprep.subr.mxu0 0.0
        %1438 = vmatpush1.xpose.msra.mxu0 0.0
        %1439 = vmatprep.subr.mxu0 0.0
        %1440 = vmatpush1.xpose.msra.mxu0 0.0
        %1441 = vmatprep.subr.mxu0 0.0
        %1442 = vmatpush1.xpose.msra.mxu0 0.0
        %1443 = vmatprep.subr.mxu0 0.0
        %1444 = vmatpush1.xpose.msra.mxu0 0.0
        %1445 = vmatprep.subr.mxu0 0.0
        %1446 = vmatpush1.xpose.msra.mxu0 0.0
        %1447 = vmatprep.subr.mxu0 0.0
        %1448 = vmatpush1.xpose.msra.mxu0 0.0
        %1449 = vmatprep.subr.mxu0 0.0
        %1450 = vmatpush1.xpose.msra.mxu0 0.0
        %1451 = vmatprep.subr.mxu0 0.0
        %1452 = vmatpush1.xpose.msra.mxu0 0.0
        %1453 = vmatprep.subr.mxu0 0.0
        %1454 = vmatpush1.xpose.msra.mxu0 0.0
        %1455 = vmatprep.subr.mxu0 0.0
        %1456 = vmatpush1.xpose.msra.mxu0 0.0
        %1457 = vmatprep.subr.mxu0 0.0
        %1458 = vmatpush1.xpose.msra.mxu0 0.0
        %1459 = vmatprep.subr.mxu0 0.0
        %1460 = vmatpush1.xpose.msra.mxu0 0.0
        %1461 = vmatprep.subr.mxu0 0.0
        %1462 = vmatpush1.xpose.msra.mxu0 0.0
        %1463 = vmatprep.subr.mxu0 0.0
        %1464 = vmatpush1.xpose.msra.mxu0 0.0
        %1465 = vmatprep.subr.mxu0 0.0
        %1466 = vmatpush1.xpose.msra.mxu0 0.0
        %1467 = vmatprep.mubr.f32.mxu0 0.0
        %v1468 = vand.u32 %v1171, 4294901760
        %v1469 = vsub.f32 %v1171, %v1468
        %v1470 = vand.u32 %v1469, 4294901760
        %1471 = vmatmul.mubr.f32.gmra.mrb[0].mxu0 %v1470
        %v1472 = vpop.f32.mrb[0].mxu0
        %v1473 = vadd.f32 %v1399, %v1472
        %v1474 = vpop.f32.mrb[0].mxu0
        %1475 = vdwg.mxu0
        %1476 = vmatprep.subr.mxu0 0.0
        %v1477 = vand.u32 %v1174, 4294901760
        %v1478 = vsub.f32 %v1174, %v1477
        %v1479 = vand.u32 %v1478, 4294901760
        %1480 = vmatpush1.xpose.msra.mxu0 %v1479
        %1481 = vmatprep.subr.mxu0 0.0
        %1482 = vmatpush1.xpose.msra.mxu0 0.0
        %1483 = vmatprep.subr.mxu0 0.0
        %1484 = vmatpush1.xpose.msra.mxu0 0.0
        %1485 = vmatprep.subr.mxu0 0.0
        %1486 = vmatpush1.xpose.msra.mxu0 0.0
        %1487 = vmatprep.subr.mxu0 0.0
        %1488 = vmatpush1.xpose.msra.mxu0 0.0
        %1489 = vmatprep.subr.mxu0 0.0
        %1490 = vmatpush1.xpose.msra.mxu0 0.0
        %1491 = vmatprep.subr.mxu0 0.0
        %1492 = vmatpush1.xpose.msra.mxu0 0.0
        %1493 = vmatprep.subr.mxu0 0.0
        %1494 = vmatpush1.xpose.msra.mxu0 0.0
        %1495 = vmatprep.subr.mxu0 0.0
        %1496 = vmatpush1.xpose.msra.mxu0 0.0
        %1497 = vmatprep.subr.mxu0 0.0
        %1498 = vmatpush1.xpose.msra.mxu0 0.0
        %1499 = vmatprep.subr.mxu0 0.0
        %1500 = vmatpush1.xpose.msra.mxu0 0.0
        %1501 = vmatprep.subr.mxu0 0.0
        %1502 = vmatpush1.xpose.msra.mxu0 0.0
        %1503 = vmatprep.subr.mxu0 0.0
        %1504 = vmatpush1.xpose.msra.mxu0 0.0
        %1505 = vmatprep.subr.mxu0 0.0
        %1506 = vmatpush1.xpose.msra.mxu0 0.0
        %1507 = vmatprep.subr.mxu0 0.0
        %1508 = vmatpush1.xpose.msra.mxu0 0.0
        %1509 = vmatprep.subr.mxu0 0.0
        %1510 = vmatpush1.xpose.msra.mxu0 0.0
        %1511 = vmatprep.subr.mxu0 0.0
        %1512 = vmatpush1.xpose.msra.mxu0 0.0
        %1513 = vmatprep.subr.mxu0 0.0
        %1514 = vmatpush1.xpose.msra.mxu0 0.0
        %1515 = vmatprep.subr.mxu0 0.0
        %1516 = vmatpush1.xpose.msra.mxu0 0.0
        %1517 = vmatprep.subr.mxu0 0.0
        %1518 = vmatpush1.xpose.msra.mxu0 0.0
        %1519 = vmatprep.subr.mxu0 0.0
        %1520 = vmatpush1.xpose.msra.mxu0 0.0
        %1521 = vmatprep.subr.mxu0 0.0
        %1522 = vmatpush1.xpose.msra.mxu0 0.0
        %1523 = vmatprep.subr.mxu0 0.0
        %1524 = vmatpush1.xpose.msra.mxu0 0.0
        %1525 = vmatprep.subr.mxu0 0.0
        %1526 = vmatpush1.xpose.msra.mxu0 0.0
        %1527 = vmatprep.subr.mxu0 0.0
        %1528 = vmatpush1.xpose.msra.mxu0 0.0
        %1529 = vmatprep.subr.mxu0 0.0
        %1530 = vmatpush1.xpose.msra.mxu0 0.0
        %1531 = vmatprep.subr.mxu0 0.0
        %1532 = vmatpush1.xpose.msra.mxu0 0.0
        %1533 = vmatprep.subr.mxu0 0.0
        %1534 = vmatpush1.xpose.msra.mxu0 0.0
        %1535 = vmatprep.subr.mxu0 0.0
        %1536 = vmatpush1.xpose.msra.mxu0 0.0
        %1537 = vmatprep.subr.mxu0 0.0
        %1538 = vmatpush1.xpose.msra.mxu0 0.0
        %1539 = vmatprep.subr.mxu0 0.0
        %1540 = vmatpush1.xpose.msra.mxu0 0.0
        %1541 = vmatprep.subr.mxu0 0.0
        %1542 = vmatpush1.xpose.msra.mxu0 0.0
        %1543 = vmatprep.mubr.f32.mxu0 0.0
        %v1544 = vand.u32 %v1171, 4294901760
        %1545 = vmatmul.mubr.f32.gmra.mrb[0].mxu0 %v1544
        %v1546 = vpop.f32.mrb[0].mxu0
        %v1547 = vadd.f32 %v1473, %v1546
        %v1548 = vpop.f32.mrb[0].mxu0
        %1549 = vdwg.mxu0
        %1550 = vmatprep.subr.mxu0 0.0
        %v1551 = vand.u32 %v1174, 4294901760
        %1552 = vmatpush1.xpose.msra.mxu0 %v1551
        %1553 = vmatprep.subr.mxu0 0.0
        %1554 = vmatpush1.xpose.msra.mxu0 0.0
        %1555 = vmatprep.subr.mxu0 0.0
        %1556 = vmatpush1.xpose.msra.mxu0 0.0
        %1557 = vmatprep.subr.mxu0 0.0
        %1558 = vmatpush1.xpose.msra.mxu0 0.0
        %1559 = vmatprep.subr.mxu0 0.0
        %1560 = vmatpush1.xpose.msra.mxu0 0.0
        %1561 = vmatprep.subr.mxu0 0.0
        %1562 = vmatpush1.xpose.msra.mxu0 0.0
        %1563 = vmatprep.subr.mxu0 0.0
        %1564 = vmatpush1.xpose.msra.mxu0 0.0
        %1565 = vmatprep.subr.mxu0 0.0
        %1566 = vmatpush1.xpose.msra.mxu0 0.0
        %1567 = vmatprep.subr.mxu0 0.0
        %1568 = vmatpush1.xpose.msra.mxu0 0.0
        %1569 = vmatprep.subr.mxu0 0.0
        %1570 = vmatpush1.xpose.msra.mxu0 0.0
        %1571 = vmatprep.subr.mxu0 0.0
        %1572 = vmatpush1.xpose.msra.mxu0 0.0
        %1573 = vmatprep.subr.mxu0 0.0
        %1574 = vmatpush1.xpose.msra.mxu0 0.0
        %1575 = vmatprep.subr.mxu0 0.0
        %1576 = vmatpush1.xpose.msra.mxu0 0.0
        %1577 = vmatprep.subr.mxu0 0.0
        %1578 = vmatpush1.xpose.msra.mxu0 0.0
        %1579 = vmatprep.subr.mxu0 0.0
        %1580 = vmatpush1.xpose.msra.mxu0 0.0
        %1581 = vmatprep.subr.mxu0 0.0
        %1582 = vmatpush1.xpose.msra.mxu0 0.0
        %1583 = vmatprep.subr.mxu0 0.0
        %1584 = vmatpush1.xpose.msra.mxu0 0.0
        %1585 = vmatprep.subr.mxu0 0.0
        %1586 = vmatpush1.xpose.msra.mxu0 0.0
        %1587 = vmatprep.subr.mxu0 0.0
        %1588 = vmatpush1.xpose.msra.mxu0 0.0
        %1589 = vmatprep.subr.mxu0 0.0
        %1590 = vmatpush1.xpose.msra.mxu0 0.0
        %1591 = vmatprep.subr.mxu0 0.0
        %1592 = vmatpush1.xpose.msra.mxu0 0.0
        %1593 = vmatprep.subr.mxu0 0.0
        %1594 = vmatpush1.xpose.msra.mxu0 0.0
        %1595 = vmatprep.subr.mxu0 0.0
        %1596 = vmatpush1.xpose.msra.mxu0 0.0
        %1597 = vmatprep.subr.mxu0 0.0
        %1598 = vmatpush1.xpose.msra.mxu0 0.0
        %1599 = vmatprep.subr.mxu0 0.0
        %1600 = vmatpush1.xpose.msra.mxu0 0.0
        %1601 = vmatprep.subr.mxu0 0.0
        %1602 = vmatpush1.xpose.msra.mxu0 0.0
        %1603 = vmatprep.subr.mxu0 0.0
        %1604 = vmatpush1.xpose.msra.mxu0 0.0
        %1605 = vmatprep.subr.mxu0 0.0
        %1606 = vmatpush1.xpose.msra.mxu0 0.0
        %1607 = vmatprep.subr.mxu0 0.0
        %1608 = vmatpush1.xpose.msra.mxu0 0.0
        %1609 = vmatprep.subr.mxu0 0.0
        %1610 = vmatpush1.xpose.msra.mxu0 0.0
        %1611 = vmatprep.subr.mxu0 0.0
        %1612 = vmatpush1.xpose.msra.mxu0 0.0
        %1613 = vmatprep.subr.mxu0 0.0
        %1614 = vmatpush1.xpose.msra.mxu0 0.0
        %1615 = vmatprep.mubr.f32.mxu0 0.0
        %v1616 = vand.u32 %v1171, 4294901760
        %1617 = vmatmul.mubr.f32.gmra.mrb[0].mxu0 %v1616
        %v1618 = vpop.f32.mrb[0].mxu0
        %v1619 = vadd.f32 %v1547, %v1618
        %v1620 = vpop.f32.mrb[0].mxu0
        %1621 = vdwg.mxu0
        %v1622 = vlaneseq
        %v1623 = vshrl.u32 %v1622, 7
        %v1624 = vstv %s180
        %v1625 = vadd.s32 %v1624, %v1623
        %v1626 = vlaneseq
        %v1627 = vand.u32 %v1626, 127
        %vm1628 = vcmp.le.s32.totalorder %v1627, %v1625
        %v1629 = vsel %vm1628, %v1619, -1e+30
        %vm1630 = vcmask 64512
        %v1631 = vsel %vm1630, %v1629, -inf
        %1632 = vmax.xlane.f32.xlu0 %v1631
        %v1633 = vpop.xlane.xlu0 %1632
        %v1634 = vsub.f32 %v1629, %v1633
        %v1635 = vmul.f32 %v1634, 1.442695
        %v1636 = vpow.pop %v1635
        %v1637 = vsel %vm1630, %v1636, 0.0
        %1638 = vadd.xlane.f32.xlu0 %v1637
        %v1639 = vpop.xlane.xlu0 %1638
        %1640 = vrot.lane.b32.xlu0 %v674, 112
        %v1641 = vpop.permute.xlu0 %1640
        %v1644 = vsel %vm1630, %v1636, 0
        %1646 = vmatprep.subr.mxu0 0.0
        %v1647 = vand.u32 %v1641, 4294901760
        %1648 = vmatpush1.msra.mxu0 %v1647
        %1649 = vmatprep.subr.mxu0 0.0
        %1650 = vmatpush1.msra.mxu0 0.0
        %1651 = vmatprep.subr.mxu0 0.0
        %1652 = vmatpush1.msra.mxu0 0.0
        %1653 = vmatprep.subr.mxu0 0.0
        %1654 = vmatpush1.msra.mxu0 0.0
        %1655 = vmatprep.subr.mxu0 0.0
        %1656 = vmatpush1.msra.mxu0 0.0
        %1657 = vmatprep.subr.mxu0 0.0
        %1658 = vmatpush1.msra.mxu0 0.0
        %1659 = vmatprep.subr.mxu0 0.0
        %1660 = vmatpush1.msra.mxu0 0.0
        %1661 = vmatprep.subr.mxu0 0.0
        %1662 = vmatpush1.msra.mxu0 0.0
        %1663 = vmatprep.subr.mxu0 0.0
        %1664 = vmatpush1.msra.mxu0 0.0
        %1665 = vmatprep.subr.mxu0 0.0
        %1666 = vmatpush1.msra.mxu0 0.0
        %1667 = vmatprep.subr.mxu0 0.0
        %1668 = vmatpush1.msra.mxu0 0.0
        %1669 = vmatprep.subr.mxu0 0.0
        %1670 = vmatpush1.msra.mxu0 0.0
        %1671 = vmatprep.subr.mxu0 0.0
        %1672 = vmatpush1.msra.mxu0 0.0
        %1673 = vmatprep.subr.mxu0 0.0
        %1674 = vmatpush1.msra.mxu0 0.0
        %1675 = vmatprep.subr.mxu0 0.0
        %1676 = vmatpush1.msra.mxu0 0.0
        %1677 = vmatprep.subr.mxu0 0.0
        %1678 = vmatpush1.msra.mxu0 0.0
        %1679 = vmatprep.subr.mxu0 0.0
        %1680 = vmatpush1.msra.mxu0 0.0
        %1681 = vmatprep.subr.mxu0 0.0
        %1682 = vmatpush1.msra.mxu0 0.0
        %1683 = vmatprep.subr.mxu0 0.0
        %1684 = vmatpush1.msra.mxu0 0.0
        %1685 = vmatprep.subr.mxu0 0.0
        %1686 = vmatpush1.msra.mxu0 0.0
        %1687 = vmatprep.subr.mxu0 0.0
        %1688 = vmatpush1.msra.mxu0 0.0
        %1689 = vmatprep.subr.mxu0 0.0
        %1690 = vmatpush1.msra.mxu0 0.0
        %1691 = vmatprep.subr.mxu0 0.0
        %1692 = vmatpush1.msra.mxu0 0.0
        %1693 = vmatprep.subr.mxu0 0.0
        %1694 = vmatpush1.msra.mxu0 0.0
        %1695 = vmatprep.subr.mxu0 0.0
        %1696 = vmatpush1.msra.mxu0 0.0
        %1697 = vmatprep.subr.mxu0 0.0
        %1698 = vmatpush1.msra.mxu0 0.0
        %1699 = vmatprep.subr.mxu0 0.0
        %1700 = vmatpush1.msra.mxu0 0.0
        %1701 = vmatprep.subr.mxu0 0.0
        %1702 = vmatpush1.msra.mxu0 0.0
        %1703 = vmatprep.subr.mxu0 0.0
        %1704 = vmatpush1.msra.mxu0 0.0
        %1705 = vmatprep.subr.mxu0 0.0
        %1706 = vmatpush1.msra.mxu0 0.0
        %1707 = vmatprep.subr.mxu0 0.0
        %1708 = vmatpush1.msra.mxu0 0.0
        %1709 = vmatprep.subr.mxu0 0.0
        %1710 = vmatpush1.msra.mxu0 0.0
        %1711 = vmatprep.mubr.f32.mxu0 0.0
        %v1712 = vand.u32 %v1644, 4294901760
        %v1713 = vsub.f32 %v1644, %v1712
        %v1714 = vand.u32 %v1713, 4294901760
        %v1715 = vsub.f32 %v1713, %v1714
        %v1716 = vand.u32 %v1715, 4294901760
        %1717 = vmatmul.mubr.f32.gmra.mrb[0].mxu0 %v1716
        %v1718 = vpop.f32.mrb[0].mxu0
        %v1719 = vadd.f32 0.0, %v1718
        %v1720 = vpop.f32.mrb[0].mxu0
        %1721 = vdwg.mxu0
        %1722 = vmatprep.subr.mxu0 0.0
        %v1723 = vand.u32 %v1641, 4294901760
        %v1724 = vsub.f32 %v1641, %v1723
        %v1725 = vand.u32 %v1724, 4294901760
        %v1726 = vsub.f32 %v1724, %v1725
        %v1727 = vand.u32 %v1726, 4294901760
        %1728 = vmatpush1.msra.mxu0 %v1727
        %1729 = vmatprep.subr.mxu0 0.0
        %1730 = vmatpush1.msra.mxu0 0.0
        %1731 = vmatprep.subr.mxu0 0.0
        %1732 = vmatpush1.msra.mxu0 0.0
        %1733 = vmatprep.subr.mxu0 0.0
        %1734 = vmatpush1.msra.mxu0 0.0
        %1735 = vmatprep.subr.mxu0 0.0
        %1736 = vmatpush1.msra.mxu0 0.0
        %1737 = vmatprep.subr.mxu0 0.0
        %1738 = vmatpush1.msra.mxu0 0.0
        %1739 = vmatprep.subr.mxu0 0.0
        %1740 = vmatpush1.msra.mxu0 0.0
        %1741 = vmatprep.subr.mxu0 0.0
        %1742 = vmatpush1.msra.mxu0 0.0
        %1743 = vmatprep.subr.mxu0 0.0
        %1744 = vmatpush1.msra.mxu0 0.0
        %1745 = vmatprep.subr.mxu0 0.0
        %1746 = vmatpush1.msra.mxu0 0.0
        %1747 = vmatprep.subr.mxu0 0.0
        %1748 = vmatpush1.msra.mxu0 0.0
        %1749 = vmatprep.subr.mxu0 0.0
        %1750 = vmatpush1.msra.mxu0 0.0
        %1751 = vmatprep.subr.mxu0 0.0
        %1752 = vmatpush1.msra.mxu0 0.0
        %1753 = vmatprep.subr.mxu0 0.0
        %1754 = vmatpush1.msra.mxu0 0.0
        %1755 = vmatprep.subr.mxu0 0.0
        %1756 = vmatpush1.msra.mxu0 0.0
        %1757 = vmatprep.subr.mxu0 0.0
        %1758 = vmatpush1.msra.mxu0 0.0
        %1759 = vmatprep.subr.mxu0 0.0
        %1760 = vmatpush1.msra.mxu0 0.0
        %1761 = vmatprep.subr.mxu0 0.0
        %1762 = vmatpush1.msra.mxu0 0.0
        %1763 = vmatprep.subr.mxu0 0.0
        %1764 = vmatpush1.msra.mxu0 0.0
        %1765 = vmatprep.subr.mxu0 0.0
        %1766 = vmatpush1.msra.mxu0 0.0
        %1767 = vmatprep.subr.mxu0 0.0
        %1768 = vmatpush1.msra.mxu0 0.0
        %1769 = vmatprep.subr.mxu0 0.0
        %1770 = vmatpush1.msra.mxu0 0.0
        %1771 = vmatprep.subr.mxu0 0.0
        %1772 = vmatpush1.msra.mxu0 0.0
        %1773 = vmatprep.subr.mxu0 0.0
        %1774 = vmatpush1.msra.mxu0 0.0
        %1775 = vmatprep.subr.mxu0 0.0
        %1776 = vmatpush1.msra.mxu0 0.0
        %1777 = vmatprep.subr.mxu0 0.0
        %1778 = vmatpush1.msra.mxu0 0.0
        %1779 = vmatprep.subr.mxu0 0.0
        %1780 = vmatpush1.msra.mxu0 0.0
        %1781 = vmatprep.subr.mxu0 0.0
        %1782 = vmatpush1.msra.mxu0 0.0
        %1783 = vmatprep.subr.mxu0 0.0
        %1784 = vmatpush1.msra.mxu0 0.0
        %1785 = vmatprep.subr.mxu0 0.0
        %1786 = vmatpush1.msra.mxu0 0.0
        %1787 = vmatprep.subr.mxu0 0.0
        %1788 = vmatpush1.msra.mxu0 0.0
        %1789 = vmatprep.subr.mxu0 0.0
        %1790 = vmatpush1.msra.mxu0 0.0
        %1791 = vmatprep.mubr.f32.mxu0 0.0
        %v1792 = vand.u32 %v1644, 4294901760
        %1793 = vmatmul.mubr.f32.gmra.mrb[0].mxu0 %v1792
        %v1794 = vpop.f32.mrb[0].mxu0
        %v1795 = vadd.f32 %v1719, %v1794
        %v1796 = vpop.f32.mrb[0].mxu0
        %1797 = vdwg.mxu0
        %1798 = vmatprep.subr.mxu0 0.0
        %v1799 = vand.u32 %v1641, 4294901760
        %v1800 = vsub.f32 %v1641, %v1799
        %1801 = vmatpush1.msra.mxu0 %v1800
        %1802 = vmatprep.subr.mxu0 0.0
        %1803 = vmatpush1.msra.mxu0 0.0
        %1804 = vmatprep.subr.mxu0 0.0
        %1805 = vmatpush1.msra.mxu0 0.0
        %1806 = vmatprep.subr.mxu0 0.0
        %1807 = vmatpush1.msra.mxu0 0.0
        %1808 = vmatprep.subr.mxu0 0.0
        %1809 = vmatpush1.msra.mxu0 0.0
        %1810 = vmatprep.subr.mxu0 0.0
        %1811 = vmatpush1.msra.mxu0 0.0
        %1812 = vmatprep.subr.mxu0 0.0
        %1813 = vmatpush1.msra.mxu0 0.0
        %1814 = vmatprep.subr.mxu0 0.0
        %1815 = vmatpush1.msra.mxu0 0.0
        %1816 = vmatprep.subr.mxu0 0.0
        %1817 = vmatpush1.msra.mxu0 0.0
        %1818 = vmatprep.subr.mxu0 0.0
        %1819 = vmatpush1.msra.mxu0 0.0
        %1820 = vmatprep.subr.mxu0 0.0
        %1821 = vmatpush1.msra.mxu0 0.0
        %1822 = vmatprep.subr.mxu0 0.0
        %1823 = vmatpush1.msra.mxu0 0.0
        %1824 = vmatprep.subr.mxu0 0.0
        %1825 = vmatpush1.msra.mxu0 0.0
        %1826 = vmatprep.subr.mxu0 0.0
        %1827 = vmatpush1.msra.mxu0 0.0
        %1828 = vmatprep.subr.mxu0 0.0
        %1829 = vmatpush1.msra.mxu0 0.0
        %1830 = vmatprep.subr.mxu0 0.0
        %1831 = vmatpush1.msra.mxu0 0.0
        %1832 = vmatprep.subr.mxu0 0.0
        %1833 = vmatpush1.msra.mxu0 0.0
        %1834 = vmatprep.subr.mxu0 0.0
        %1835 = vmatpush1.msra.mxu0 0.0
        %1836 = vmatprep.subr.mxu0 0.0
        %1837 = vmatpush1.msra.mxu0 0.0
        %1838 = vmatprep.subr.mxu0 0.0
        %1839 = vmatpush1.msra.mxu0 0.0
        %1840 = vmatprep.subr.mxu0 0.0
        %1841 = vmatpush1.msra.mxu0 0.0
        %1842 = vmatprep.subr.mxu0 0.0
        %1843 = vmatpush1.msra.mxu0 0.0
        %1844 = vmatprep.subr.mxu0 0.0
        %1845 = vmatpush1.msra.mxu0 0.0
        %1846 = vmatprep.subr.mxu0 0.0
        %1847 = vmatpush1.msra.mxu0 0.0
        %1848 = vmatprep.subr.mxu0 0.0
        %1849 = vmatpush1.msra.mxu0 0.0
        %1850 = vmatprep.subr.mxu0 0.0
        %1851 = vmatpush1.msra.mxu0 0.0
        %1852 = vmatprep.subr.mxu0 0.0
        %1853 = vmatpush1.msra.mxu0 0.0
        %1854 = vmatprep.subr.mxu0 0.0
        %1855 = vmatpush1.msra.mxu0 0.0
        %1856 = vmatprep.subr.mxu0 0.0
        %1857 = vmatpush1.msra.mxu0 0.0
        %1858 = vmatprep.subr.mxu0 0.0
        %1859 = vmatpush1.msra.mxu0 0.0
        %1860 = vmatprep.subr.mxu0 0.0
        %1861 = vmatpush1.msra.mxu0 0.0
        %1862 = vmatprep.subr.mxu0 0.0
        %1863 = vmatpush1.msra.mxu0 0.0
        %1864 = vmatprep.mubr.f32.mxu0 0.0
        %v1865 = vand.u32 %v1644, 4294901760
        %v1866 = vsub.f32 %v1644, %v1865
        %1867 = vmatmul.mubr.f32.gmra.mrb[0].mxu0 %v1866
        %v1868 = vpop.f32.mrb[0].mxu0
        %v1869 = vadd.f32 %v1795, %v1868
        %v1870 = vpop.f32.mrb[0].mxu0
        %1871 = vdwg.mxu0
        %1872 = vmatprep.subr.mxu0 0.0
        %v1873 = vand.u32 %v1641, 4294901760
        %1874 = vmatpush1.msra.mxu0 %v1873
        %1875 = vmatprep.subr.mxu0 0.0
        %1876 = vmatpush1.msra.mxu0 0.0
        %1877 = vmatprep.subr.mxu0 0.0
        %1878 = vmatpush1.msra.mxu0 0.0
        %1879 = vmatprep.subr.mxu0 0.0
        %1880 = vmatpush1.msra.mxu0 0.0
        %1881 = vmatprep.subr.mxu0 0.0
        %1882 = vmatpush1.msra.mxu0 0.0
        %1883 = vmatprep.subr.mxu0 0.0
        %1884 = vmatpush1.msra.mxu0 0.0
        %1885 = vmatprep.subr.mxu0 0.0
        %1886 = vmatpush1.msra.mxu0 0.0
        %1887 = vmatprep.subr.mxu0 0.0
        %1888 = vmatpush1.msra.mxu0 0.0
        %1889 = vmatprep.subr.mxu0 0.0
        %1890 = vmatpush1.msra.mxu0 0.0
        %1891 = vmatprep.subr.mxu0 0.0
        %1892 = vmatpush1.msra.mxu0 0.0
        %1893 = vmatprep.subr.mxu0 0.0
        %1894 = vmatpush1.msra.mxu0 0.0
        %1895 = vmatprep.subr.mxu0 0.0
        %1896 = vmatpush1.msra.mxu0 0.0
        %1897 = vmatprep.subr.mxu0 0.0
        %1898 = vmatpush1.msra.mxu0 0.0
        %1899 = vmatprep.subr.mxu0 0.0
        %1900 = vmatpush1.msra.mxu0 0.0
        %1901 = vmatprep.subr.mxu0 0.0
        %1902 = vmatpush1.msra.mxu0 0.0
        %1903 = vmatprep.subr.mxu0 0.0
        %1904 = vmatpush1.msra.mxu0 0.0
        %1905 = vmatprep.subr.mxu0 0.0
        %1906 = vmatpush1.msra.mxu0 0.0
        %1907 = vmatprep.subr.mxu0 0.0
        %1908 = vmatpush1.msra.mxu0 0.0
        %1909 = vmatprep.subr.mxu0 0.0
        %1910 = vmatpush1.msra.mxu0 0.0
        %1911 = vmatprep.subr.mxu0 0.0
        %1912 = vmatpush1.msra.mxu0 0.0
        %1913 = vmatprep.subr.mxu0 0.0
        %1914 = vmatpush1.msra.mxu0 0.0
        %1915 = vmatprep.subr.mxu0 0.0
        %1916 = vmatpush1.msra.mxu0 0.0
        %1917 = vmatprep.subr.mxu0 0.0
        %1918 = vmatpush1.msra.mxu0 0.0
        %1919 = vmatprep.subr.mxu0 0.0
        %1920 = vmatpush1.msra.mxu0 0.0
        %1921 = vmatprep.subr.mxu0 0.0
        %1922 = vmatpush1.msra.mxu0 0.0
        %1923 = vmatprep.subr.mxu0 0.0
        %1924 = vmatpush1.msra.mxu0 0.0
        %1925 = vmatprep.subr.mxu0 0.0
        %1926 = vmatpush1.msra.mxu0 0.0
        %1927 = vmatprep.subr.mxu0 0.0
        %1928 = vmatpush1.msra.mxu0 0.0
        %1929 = vmatprep.subr.mxu0 0.0
        %1930 = vmatpush1.msra.mxu0 0.0
        %1931 = vmatprep.subr.mxu0 0.0
        %1932 = vmatpush1.msra.mxu0 0.0
        %1933 = vmatprep.subr.mxu0 0.0
        %1934 = vmatpush1.msra.mxu0 0.0
        %1935 = vmatprep.subr.mxu0 0.0
        %1936 = vmatpush1.msra.mxu0 0.0
        %1937 = vmatprep.mubr.f32.mxu0 0.0
        %v1938 = vand.u32 %v1644, 4294901760
        %v1939 = vsub.f32 %v1644, %v1938
        %v1940 = vand.u32 %v1939, 4294901760
        %1941 = vmatmul.mubr.f32.gmra.mrb[0].mxu0 %v1940
        %v1942 = vpop.f32.mrb[0].mxu0
        %v1943 = vadd.f32 %v1869, %v1942
        %v1944 = vpop.f32.mrb[0].mxu0
        %1945 = vdwg.mxu0
        %1946 = vmatprep.subr.mxu0 0.0
        %v1947 = vand.u32 %v1641, 4294901760
        %v1948 = vsub.f32 %v1641, %v1947
        %v1949 = vand.u32 %v1948, 4294901760
        %1950 = vmatpush1.msra.mxu0 %v1949
        %1951 = vmatprep.subr.mxu0 0.0
        %1952 = vmatpush1.msra.mxu0 0.0
        %1953 = vmatprep.subr.mxu0 0.0
        %1954 = vmatpush1.msra.mxu0 0.0
        %1955 = vmatprep.subr.mxu0 0.0
        %1956 = vmatpush1.msra.mxu0 0.0
        %1957 = vmatprep.subr.mxu0 0.0
        %1958 = vmatpush1.msra.mxu0 0.0
        %1959 = vmatprep.subr.mxu0 0.0
        %1960 = vmatpush1.msra.mxu0 0.0
        %1961 = vmatprep.subr.mxu0 0.0
        %1962 = vmatpush1.msra.mxu0 0.0
        %1963 = vmatprep.subr.mxu0 0.0
        %1964 = vmatpush1.msra.mxu0 0.0
        %1965 = vmatprep.subr.mxu0 0.0
        %1966 = vmatpush1.msra.mxu0 0.0
        %1967 = vmatprep.subr.mxu0 0.0
        %1968 = vmatpush1.msra.mxu0 0.0
        %1969 = vmatprep.subr.mxu0 0.0
        %1970 = vmatpush1.msra.mxu0 0.0
        %1971 = vmatprep.subr.mxu0 0.0
        %1972 = vmatpush1.msra.mxu0 0.0
        %1973 = vmatprep.subr.mxu0 0.0
        %1974 = vmatpush1.msra.mxu0 0.0
        %1975 = vmatprep.subr.mxu0 0.0
        %1976 = vmatpush1.msra.mxu0 0.0
        %1977 = vmatprep.subr.mxu0 0.0
        %1978 = vmatpush1.msra.mxu0 0.0
        %1979 = vmatprep.subr.mxu0 0.0
        %1980 = vmatpush1.msra.mxu0 0.0
        %1981 = vmatprep.subr.mxu0 0.0
        %1982 = vmatpush1.msra.mxu0 0.0
        %1983 = vmatprep.subr.mxu0 0.0
        %1984 = vmatpush1.msra.mxu0 0.0
        %1985 = vmatprep.subr.mxu0 0.0
        %1986 = vmatpush1.msra.mxu0 0.0
        %1987 = vmatprep.subr.mxu0 0.0
        %1988 = vmatpush1.msra.mxu0 0.0
        %1989 = vmatprep.subr.mxu0 0.0
        %1990 = vmatpush1.msra.mxu0 0.0
        %1991 = vmatprep.subr.mxu0 0.0
        %1992 = vmatpush1.msra.mxu0 0.0
        %1993 = vmatprep.subr.mxu0 0.0
        %1994 = vmatpush1.msra.mxu0 0.0
        %1995 = vmatprep.subr.mxu0 0.0
        %1996 = vmatpush1.msra.mxu0 0.0
        %1997 = vmatprep.subr.mxu0 0.0
        %1998 = vmatpush1.msra.mxu0 0.0
        %1999 = vmatprep.subr.mxu0 0.0
        %2000 = vmatpush1.msra.mxu0 0.0
        %2001 = vmatprep.subr.mxu0 0.0
        %2002 = vmatpush1.msra.mxu0 0.0
        %2003 = vmatprep.subr.mxu0 0.0
        %2004 = vmatpush1.msra.mxu0 0.0
        %2005 = vmatprep.subr.mxu0 0.0
        %2006 = vmatpush1.msra.mxu0 0.0
        %2007 = vmatprep.subr.mxu0 0.0
        %2008 = vmatpush1.msra.mxu0 0.0
        %2009 = vmatprep.subr.mxu0 0.0
        %2010 = vmatpush1.msra.mxu0 0.0
        %2011 = vmatprep.subr.mxu0 0.0
        %2012 = vmatpush1.msra.mxu0 0.0
        %2013 = vmatprep.mubr.f32.mxu0 0.0
        %v2014 = vand.u32 %v1644, 4294901760
        %2015 = vmatmul.mubr.f32.gmra.mrb[0].mxu0 %v2014
        %v2016 = vpop.f32.mrb[0].mxu0
        %v2017 = vadd.f32 %v1943, %v2016
        %v2018 = vpop.f32.mrb[0].mxu0
        %2019 = vdwg.mxu0
        %2020 = vmatprep.subr.mxu0 0.0
        %v2021 = vand.u32 %v1641, 4294901760
        %2022 = vmatpush1.msra.mxu0 %v2021
        %2023 = vmatprep.subr.mxu0 0.0
        %2024 = vmatpush1.msra.mxu0 0.0
        %2025 = vmatprep.subr.mxu0 0.0
        %2026 = vmatpush1.msra.mxu0 0.0
        %2027 = vmatprep.subr.mxu0 0.0
        %2028 = vmatpush1.msra.mxu0 0.0
        %2029 = vmatprep.subr.mxu0 0.0
        %2030 = vmatpush1.msra.mxu0 0.0
        %2031 = vmatprep.subr.mxu0 0.0
        %2032 = vmatpush1.msra.mxu0 0.0
        %2033 = vmatprep.subr.mxu0 0.0
        %2034 = vmatpush1.msra.mxu0 0.0
        %2035 = vmatprep.subr.mxu0 0.0
        %2036 = vmatpush1.msra.mxu0 0.0
        %2037 = vmatprep.subr.mxu0 0.0
        %2038 = vmatpush1.msra.mxu0 0.0
        %2039 = vmatprep.subr.mxu0 0.0
        %2040 = vmatpush1.msra.mxu0 0.0
        %2041 = vmatprep.subr.mxu0 0.0
        %2042 = vmatpush1.msra.mxu0 0.0
        %2043 = vmatprep.subr.mxu0 0.0
        %2044 = vmatpush1.msra.mxu0 0.0
        %2045 = vmatprep.subr.mxu0 0.0
        %2046 = vmatpush1.msra.mxu0 0.0
        %2047 = vmatprep.subr.mxu0 0.0
        %2048 = vmatpush1.msra.mxu0 0.0
        %2049 = vmatprep.subr.mxu0 0.0
        %2050 = vmatpush1.msra.mxu0 0.0
        %2051 = vmatprep.subr.mxu0 0.0
        %2052 = vmatpush1.msra.mxu0 0.0
        %2053 = vmatprep.subr.mxu0 0.0
        %2054 = vmatpush1.msra.mxu0 0.0
        %2055 = vmatprep.subr.mxu0 0.0
        %2056 = vmatpush1.msra.mxu0 0.0
        %2057 = vmatprep.subr.mxu0 0.0
        %2058 = vmatpush1.msra.mxu0 0.0
        %2059 = vmatprep.subr.mxu0 0.0
        %2060 = vmatpush1.msra.mxu0 0.0
        %2061 = vmatprep.subr.mxu0 0.0
        %2062 = vmatpush1.msra.mxu0 0.0
        %2063 = vmatprep.subr.mxu0 0.0
        %2064 = vmatpush1.msra.mxu0 0.0
        %2065 = vmatprep.subr.mxu0 0.0
        %2066 = vmatpush1.msra.mxu0 0.0
        %2067 = vmatprep.subr.mxu0 0.0
        %2068 = vmatpush1.msra.mxu0 0.0
        %2069 = vmatprep.subr.mxu0 0.0
        %2070 = vmatpush1.msra.mxu0 0.0
        %2071 = vmatprep.subr.mxu0 0.0
        %2072 = vmatpush1.msra.mxu0 0.0
        %2073 = vmatprep.subr.mxu0 0.0
        %2074 = vmatpush1.msra.mxu0 0.0
        %2075 = vmatprep.subr.mxu0 0.0
        %2076 = vmatpush1.msra.mxu0 0.0
        %2077 = vmatprep.subr.mxu0 0.0
        %2078 = vmatpush1.msra.mxu0 0.0
        %2079 = vmatprep.subr.mxu0 0.0
        %2080 = vmatpush1.msra.mxu0 0.0
        %2081 = vmatprep.subr.mxu0 0.0
        %2082 = vmatpush1.msra.mxu0 0.0
        %2083 = vmatprep.subr.mxu0 0.0
        %2084 = vmatpush1.msra.mxu0 0.0
        %2085 = vmatprep.mubr.f32.mxu0 0.0
        %v2086 = vand.u32 %v1644, 4294901760
        %2087 = vmatmul.mubr.f32.gmra.mrb[0].mxu0 %v2086
        %v2088 = vpop.f32.mrb[0].mxu0
        %v2089 = vadd.f32 %v2017, %v2088
        %v2090 = vpop.f32.mrb[0].mxu0
        %2091 = vdwg.mxu0
        %v2092 = vrcp.pop %v1639
        %v2093 = vmul.f32 %v2089, %v2092
        %2094 = vst.msk [vmem:[%s175] sm:$0xff] %vm1169, %v2093
        %s2095 = sand.u32 %s107, 1
        %s2096 = scalar_lea.sflag [#allocation3], %s2095
        %s2097 = sand.u32 %s107, 1
        %s2098 = smul.addr %s2097, 8
        %s2099 = scalar_lea.vmem [#allocation2], %s2098
        // Predicated region
        $region33: #{tpu_custom_call.1} parent=31 // pred_check
          %p2100 = pneg %p117
        $region34: #{tpu_custom_call.1} parent=31 // pred_check_branch
          %2102 = sbr.rel (%p2100) target = $region36
        $region35: #{tpu_custom_call.1} parent=31 // pred_region
          %s2104 = ssub.s32 128, 128
          %2105 = vsyncadd %s2096, %s2104
          %s2106 = sadd.s32 %s22, %s21
          %s2107 = smul.addr %s2106, 128
          %s2108 = scalar_lea.hbm %s3, %s2107
          %s2110 = sshll.u32 %s2099, 4
          %s2111 = int_to_ptr.vmem [resolvable:$true] %s2110
          %2113 = dma.vmem_to_hbm [thread:$0]  %s2111, 128, %s2108, %s2096
        $region36: #{tpu_custom_call.1} parent=31 // pred_fallthru
          _
      $region32: #{tpu_custom_call.1} parent=5 // pred_fallthru
        _
      %p2114 = scmp.le.s32.totalorder 2, %s12
      // Predicated region
      $region37: #{tpu_custom_call.1} parent=5 // pred_check
        %p2115 = pneg %p2114
      $region38: #{tpu_custom_call.1} parent=5 // pred_check_branch
        %2117 = sbr.rel (%p2115) target = $region40
      $region39: #{tpu_custom_call.1} parent=5 // pred_region
        %s2118 = ssub.s32 %s12, 2
        // Predicated region
        $region41: #{tpu_custom_call.1} parent=39 // pred_check
          %p2119 = pneg %p123
        $region42: #{tpu_custom_call.1} parent=39 // pred_check_branch
          %2121 = sbr.rel (%p2119) target = $region44
        $region43: #{tpu_custom_call.1} parent=39 // pred_region
          %s2122 = sand.u32 %s108, 1
          %s2123 = scalar_lea.sflag [#allocation3], %s2122
          %s2124 = sand.u32 %s108, 1
          %s2125 = smul.addr %s2124, 8
          %s2126 = scalar_lea.vmem [#allocation2], %s2125
          %2127 = dma.done %s2123, 128
        $region44: #{tpu_custom_call.1} parent=39 // pred_fallthru
          _
      $region40: #{tpu_custom_call.1} parent=5 // pred_fallthru
        _
    $region6: #{tpu_custom_call.1} parent=1 // loop_footer
      %s16 = sadd.s32 1, %s12
    $region7: #{tpu_custom_call.1} parent=1 // loop_footer_branch
      %11 = sbr.rel target = $region3
    $region8: #{tpu_custom_call.1} parent=1 // loop_exit
      _
    %2128 = vsyncpa [#allocation3], 1
    %s2129 = scalar_lea.sflag [#allocation3], 1
    %2130 = vsyncpa %s2129, 1

</llo_original>
